<compile_context>
chip_gen: v7x
topology: tpu7x:2x2x1
jax: 0.10.0
libtpu: 0.0.40
codegen_flags: <defaults>
</compile_context>

<pallas_src>
import jax
import jax.numpy as jnp
from jax.experimental import pallas as pl
from jax.experimental.pallas import tpu as pltpu

BN_EPS = 1e-5


def _bn_relu_fused(h, gamma, beta):
    """Training-mode BatchNorm1d + ReLU on a (C, M) slab.

    Two-pass (centered) statistics in f32: mean first, then variance of (h - mean).
    This avoids the catastrophic cancellation of the one-pass E[x^2]-E[x]^2 form when
    |mean| >> std (true for post-ReLU activations). Biased variance, like PyTorch
    training mode. gamma / beta are (C, 1) columns broadcast along the lane (M) axis.
    The normalize+affine+ReLU collapses to one FMA + max per element.
    """
    inv_m = 1.0 / h.shape[1]                                # static Python float
    mean = jnp.sum(h, axis=1, keepdims=True) * inv_m        # (C, 1)
    centered = h - mean
    var = jnp.sum(centered * centered, axis=1, keepdims=True) * inv_m
    scale = gamma * jax.lax.rsqrt(var + BN_EPS)             # (C, 1)  (EUP rsqrt)
    shift = beta - mean * scale                             # (C, 1)
    return jnp.maximum(h * scale + shift, 0.0)              # one FMA + max per element


def conv_proj_kernel(x_ref,      # (N, Cin, L)  f32  PyTorch NCL layout
                     w1_ref,     # (H, Cin)     bf16 PyTorch conv weight layout (O, I)
                     bn_ref,     # (H, 8)       f32  packed per-channel params
                     w2_hbm,     # (H, H)       bf16 raw HBM ref (memory_space=pl.ANY)
                     w3_hbm,     # (Cout, H)    bf16 raw HBM ref (memory_space=pl.ANY)
                     o_ref,      # (N, Cout, L) f32
                     h_ref,      # scratch: (H, M) f32
                     w2_vmem,    # scratch: (H, H) bf16
                     w3_vmem,    # scratch: (Cout, H) bf16
                     dma_sem):   # scratch: DMA sems (2,)
    n_batch, _, length = x_ref.shape
    out_ch = o_ref.shape[1]

    # Kick off the layer-2 / layer-3 weight fetches immediately so the HBM latency hides
    # behind the layer-1 matmul + BN (they are not needed until layers 2 and 3).
    w2_cp = pltpu.make_async_copy(w2_hbm, w2_vmem, dma_sem.at[0])
    w3_cp = pltpu.make_async_copy(w3_hbm, w3_vmem, dma_sem.at[1])
    w2_cp.start()
    w3_cp.start()

    # Per-channel params packed in one lane-padded slab: cols 0..4 = g1, be1, g2, be2, b3.
    g1 = bn_ref[:, 0:1]
    be1 = bn_ref[:, 1:2]
    g2 = bn_ref[:, 2:3]
    be2 = bn_ref[:, 3:4]
    b3 = bn_ref[0:out_ch, 4:5]

    # Layer 1: Conv1d(in, hidden, 1) as N per-batch W1 @ x[n] MXU matmuls written to lane
    # slices of the (H, M) scratch. Slice starts are multiples of L (L % 128 == 0 asserted
    # in the wrapper), so the stores are tile-aligned / lane-dense. Conv bias b1 is dropped:
    # it cancels exactly under training-mode BatchNorm mean subtraction.
    for n in range(n_batch):
        h_ref[:, n * length:(n + 1) * length] = jnp.dot(
            w1_ref[...], x_ref[n].astype(jnp.bfloat16),
            preferred_element_type=jnp.float32)
    h = _bn_relu_fused(h_ref[...], g1, be1)                       # (H, M) f32

    # Layer 2: Conv1d(hidden, hidden, 1) (bias dropped, same reason) + BN + ReLU.
    w2_cp.wait()
    h = jnp.dot(w2_vmem[...], h.astype(jnp.bfloat16),
                preferred_element_type=jnp.float32)               # (H, M) f32
    h = _bn_relu_fused(h, g2, be2)

    # Layer 3: Conv1d(hidden, out, 1) with its bias.
    w3_cp.wait()
    y = jnp.dot(w3_vmem[...], h.astype(jnp.bfloat16),
                preferred_element_type=jnp.float32) + b3          # (Cout, M) f32

    # Unpack (Cout, M) -> (N, Cout, L): static lane slices at multiples of L; with
    # L % 128 == 0 every store is a full-width (lane-dense) vst.
    for n in range(n_batch):
        o_ref[n, :, :] = y[:, n * length:(n + 1) * length].astype(o_ref.dtype)


def _pad(n, g):
    return ((n + g - 1) // g) * g


def _vmem_footprint_bytes(N, Cin, L, H, Cout, M):
    """Footprint derived from the real allocation list (tile-padded), not a guess."""
    f32, bf16 = 4, 2
    operands = (
        N * _pad(Cin, 8) * _pad(L, 128) * f32          # x operand buffer
        + _pad(H, 16) * _pad(Cin, 128) * bf16          # w1 operand buffer (bf16 tile = 16)
        + _pad(H, 8) * 128 * f32                       # packed per-channel params (lane-padded)
        + N * _pad(Cout, 8) * _pad(L, 128) * f32       # output buffer
    )
    scratch = (
        _pad(H, 8) * _pad(M, 128) * f32                # (H, M) layer-1 scratch
        + _pad(H, 16) * _pad(H, 128) * bf16            # w2 VMEM copy
        + _pad(Cout, 16) * _pad(H, 128) * bf16         # w3 VMEM copy
    )
    # Live values inside the body: ~3 f32 (H, M) temporaries (BN temps, layer-2/3 results)
    # plus one bf16 cast of the same slab.
    live = 3 * H * M * f32 + H * M * bf16
    return operands + scratch + live


def conv_proj_forward(x_ncl, kparams):
    """x_ncl: (N, C_in, L) float32 (PyTorch NCL layout). Returns (N, C_out, L) f32."""
    N, Cin, L = x_ncl.shape
    H = kparams["w1"].shape[0]
    Cout = kparams["w3"].shape[0]
    M = N * L

    # Lane-dense output stores (the biggest single out-spec lever) require L % 128 == 0;
    # pad L upstream (or restructure the output slicing) otherwise.
    assert L % 128 == 0, "L must be a multiple of 128 for lane-dense output stores"
    assert H % 8 == 0 and Cout % 8 == 0, "channel counts must be sublane-aligned (8)"

    # Generation-aware VMEM budget (v5e/v6e: 128 MiB, v7x: 64 MiB per core).
    try:
        vmem_cap = int(pltpu.get_tpu_info().vmem_capacity_bytes)
    except Exception:  # conservative fallback: assume the smallest (v7x) VMEM
        vmem_cap = 64 * (1 << 20)

    vmem_needed = _vmem_footprint_bytes(N, Cin, L, H, Cout, M)
    # TODO(synk): when this trips (large N*L), switch to the two-sweep, M-tiled BN
    # structure with an M grid axis marked "parallel" (see header comment).
    assert vmem_needed < vmem_cap // 2, (
        "monolithic CONV kernel would not fit VMEM; needs an M-tiled two-sweep BN")
    vmem_limit = int(min(0.8 * vmem_cap, max(1.5 * vmem_needed, 8 * (1 << 20))))

    full = lambda shape: pl.BlockSpec(shape, lambda: tuple(0 for _ in shape))
    hbm = pl.BlockSpec(memory_space=pl.ANY)    # raw HBM ref, DMA'd manually in-kernel

    return pl.pallas_call(
        conv_proj_kernel,
        out_shape=jax.ShapeDtypeStruct((N, Cout, L), jnp.float32),
        grid=(),
        in_specs=[
            full(x_ncl.shape),
            full(kparams["w1"].shape),
            full(kparams["bn"].shape),
            hbm,                      # w2
            hbm,                      # w3
        ],
        out_specs=full((N, Cout, L)),
        scratch_shapes=[
            pltpu.VMEM((H, M), jnp.float32),       # layer-1 output slab
            pltpu.VMEM((H, H), jnp.bfloat16),      # w2 landing buffer
            pltpu.VMEM((Cout, H), jnp.bfloat16),   # w3 landing buffer
            pltpu.SemaphoreType.DMA((2,)),
        ],
        compiler_params=pltpu.CompilerParams(vmem_limit_bytes=vmem_limit),
    )(x_ncl, kparams["w1"], kparams["bn"], kparams["w2"], kparams["w3"])


def init_torch_params(key, in_size, hidden_size, out_size):
    """Deterministic synthetic parameters in the native PyTorch layouts (f32)."""
    ks = jax.random.split(key, 6)

    def u(k, shape, fan_in):
        bound = 1.0 / jnp.sqrt(fan_in)
        return jax.random.uniform(k, shape, jnp.float32, -bound, bound)

    return {
        "w1": u(ks[0], (hidden_size, in_size), in_size),      # Conv1d weight (O, I)
        "b1": u(ks[1], (hidden_size,), in_size),
        "g1": jnp.ones((hidden_size,), jnp.float32),
        "be1": jnp.zeros((hidden_size,), jnp.float32),
        "w2": u(ks[2], (hidden_size, hidden_size), hidden_size),
        "b2": u(ks[3], (hidden_size,), hidden_size),
        "g2": jnp.ones((hidden_size,), jnp.float32),
        "be2": jnp.zeros((hidden_size,), jnp.float32),
        "w3": u(ks[4], (out_size, hidden_size), hidden_size),
        "b3": u(ks[5], (out_size,), hidden_size),
    }


def prepare_kernel_params(p):
    """One-time (cacheable) prep for the kernel:
    * bf16 conv weights for the MXU,
    * the five per-channel vectors (g1, be1, g2, be2, b3) packed into ONE (H, 8) f32
      slab (one lane-padded VMEM buffer / one DMA instead of five),
    * pre-BN conv biases b1/b2 dropped (exact under training-mode BatchNorm)."""
    H = p["w1"].shape[0]
    Cout = p["w3"].shape[0]
    bn = jnp.zeros((H, 8), jnp.float32)
    bn = bn.at[:, 0].set(p["g1"].astype(jnp.float32))
    bn = bn.at[:, 1].set(p["be1"].astype(jnp.float32))
    bn = bn.at[:, 2].set(p["g2"].astype(jnp.float32))
    bn = bn.at[:, 3].set(p["be2"].astype(jnp.float32))
    bn = bn.at[:Cout, 4].set(p["b3"].astype(jnp.float32))
    return {
        "w1": p["w1"].astype(jnp.bfloat16),
        "w2": p["w2"].astype(jnp.bfloat16),
        "w3": p["w3"].astype(jnp.bfloat16),
        "bn": bn,
    }


def reference_forward(x_ncl, p):
    """Pure-JAX f32 reference of the exact PyTorch forward (conv biases included)."""
    def conv1x1(h, w, b):                                     # h (N,C,L), w (O,C), b (O,)
        return jnp.einsum('oc,ncl->nol', w, h) + b[None, :, None]

    def bn_relu(h, g, be):
        m = jnp.mean(h, axis=(0, 2), keepdims=True)
        v = jnp.mean((h - m) ** 2, axis=(0, 2), keepdims=True)
        h = (h - m) / jnp.sqrt(v + BN_EPS) * g[None, :, None] + be[None, :, None]
        return jnp.maximum(h, 0.0)

    h = bn_relu(conv1x1(x_ncl, p["w1"], p["b1"]), p["g1"], p["be1"])
    h = bn_relu(conv1x1(h, p["w2"], p["b2"]), p["g2"], p["be2"])
    return conv1x1(h, p["w3"], p["b3"])


if __name__ == "__main__":
    # Scaled-down shapes consistent with CONV(in=512, hidden=1024, out=256, 'proj').
    # L = 128 keeps the output stores lane-dense (L is the lane axis of the output).
    # NOTE: tune / benchmark at the real 512/1024/256 channel counts — at these demo
    # sizes the kernel is pure launch/DMA overhead and MXU utilization is meaningless.
    N, L = 2, 128
    in_size, hidden_size, out_size = 64, 128, 32

    key = jax.random.PRNGKey(0)
    k_x, k_p = jax.random.split(key)
    x = jax.random.normal(k_x, (N, in_size, L), jnp.float32)   # NCL, like nn.Conv1d input

    torch_params = init_torch_params(k_p, in_size, hidden_size, out_size)
    kparams = prepare_kernel_params(torch_params)

    out = jax.block_until_ready(conv_proj_forward(x, kparams))
    ref = reference_forward(x, torch_params)

    assert out.shape == (N, out_size, L)
    assert bool(jnp.all(jnp.isfinite(out)))
    # bf16 matmuls (f32 accumulation) -> loosened tolerance vs the pure-f32 reference.
    max_err = float(jnp.max(jnp.abs(out - ref)))
    mean_err = float(jnp.mean(jnp.abs(out - ref)))
    assert max_err < 0.1 and mean_err < 0.02, (max_err, mean_err)

    print("KERNEL_OK")
</pallas_src>

<mosaic_0001>
module attributes {stable_mosaic.version = 11 : i64} {
  func.func @conv_proj_kernel(%arg0: memref<2x64x128xf32, #tpu.memory_space<vmem>>, %arg1: memref<128x64xbf16, #tpu.memory_space<vmem>>, %arg2: memref<128x8xf32, #tpu.memory_space<vmem>>, %arg3: memref<128x128xbf16, #tpu.memory_space<any>>, %arg4: memref<32x128xbf16, #tpu.memory_space<any>>, %arg5: memref<2x32x128xf32, #tpu.memory_space<vmem>>, %arg6: memref<128x256xf32, #tpu.memory_space<vmem>>, %arg7: memref<128x128xbf16, #tpu.memory_space<vmem>>, %arg8: memref<32x128xbf16, #tpu.memory_space<vmem>>, %arg9: memref<2x!tpu.dma_semaphore, #tpu.memory_space<semaphore_mem>>) attributes {dimension_semantics = [], scalar_prefetch = 0 : i64, scratch_operands = 4 : i64, tpu.core_type = #tpu.core_type<tc>} {
    %c0_i32 = arith.constant 0 : i32
    %0 = tpu.memref_slice %arg9[%c0_i32] : memref<2x!tpu.dma_semaphore, #tpu.memory_space<semaphore_mem>> -> memref<1x!tpu.dma_semaphore, #tpu.memory_space<semaphore_mem>>
    %1 = tpu.memref_squeeze %0 : memref<1x!tpu.dma_semaphore, #tpu.memory_space<semaphore_mem>> -> memref<!tpu.dma_semaphore, #tpu.memory_space<semaphore_mem>>
    tpu.enqueue_dma source(%arg3 : memref<128x128xbf16, #tpu.memory_space<any>>) target(%arg7 : memref<128x128xbf16, #tpu.memory_space<vmem>>) target_semaphore(%1 : memref<!tpu.dma_semaphore, #tpu.memory_space<semaphore_mem>>)
    %c1_i32 = arith.constant 1 : i32
    %2 = tpu.memref_slice %arg9[%c1_i32] : memref<2x!tpu.dma_semaphore, #tpu.memory_space<semaphore_mem>> -> memref<1x!tpu.dma_semaphore, #tpu.memory_space<semaphore_mem>>
    %3 = tpu.memref_squeeze %2 : memref<1x!tpu.dma_semaphore, #tpu.memory_space<semaphore_mem>> -> memref<!tpu.dma_semaphore, #tpu.memory_space<semaphore_mem>>
    tpu.enqueue_dma source(%arg4 : memref<32x128xbf16, #tpu.memory_space<any>>) target(%arg8 : memref<32x128xbf16, #tpu.memory_space<vmem>>) target_semaphore(%3 : memref<!tpu.dma_semaphore, #tpu.memory_space<semaphore_mem>>)
    %c0 = arith.constant 0 : index
    %c0_0 = arith.constant 0 : index
    %4 = vector.load %arg2[%c0, %c0_0] : memref<128x8xf32, #tpu.memory_space<vmem>>, vector<128x1xf32>
    %c0_1 = arith.constant 0 : index
    %c1 = arith.constant 1 : index
    %5 = vector.load %arg2[%c0_1, %c1] : memref<128x8xf32, #tpu.memory_space<vmem>>, vector<128x1xf32>
    %c0_2 = arith.constant 0 : index
    %c2 = arith.constant 2 : index
    %6 = vector.load %arg2[%c0_2, %c2] : memref<128x8xf32, #tpu.memory_space<vmem>>, vector<128x1xf32>
    %c0_3 = arith.constant 0 : index
    %c3 = arith.constant 3 : index
    %7 = vector.load %arg2[%c0_3, %c3] : memref<128x8xf32, #tpu.memory_space<vmem>>, vector<128x1xf32>
    %c0_4 = arith.constant 0 : index
    %c4 = arith.constant 4 : index
    %8 = vector.load %arg2[%c0_4, %c4] : memref<128x8xf32, #tpu.memory_space<vmem>>, vector<32x1xf32>
    %c0_5 = arith.constant 0 : index
    %c0_6 = arith.constant 0 : index
    %9 = vector.load %arg1[%c0_5, %c0_6] : memref<128x64xbf16, #tpu.memory_space<vmem>>, vector<128x64xbf16>
    %c0_7 = arith.constant 0 : index
    %c0_8 = arith.constant 0 : index
    %c0_9 = arith.constant 0 : index
    %10 = vector.load %arg0[%c0_7, %c0_8, %c0_9] : memref<2x64x128xf32, #tpu.memory_space<vmem>>, vector<1x64x128xf32>
    %11 = vector.shape_cast %10 : vector<1x64x128xf32> to vector<64x128xf32>
    %12 = arith.truncf %11 : vector<64x128xf32> to vector<64x128xbf16>
    %cst = arith.constant dense<0.000000e+00> : vector<128x128xf32>
    %13 = tpu.matmul %9, %12, %cst {dimension_numbers = #tpu.dot_dimension_numbers<[1], [0], [0], [1], [0, 0, 1, 1], [], []>} : vector<128x64xbf16>, vector<64x128xbf16>, vector<128x128xf32> -> vector<128x128xf32>
    %c0_10 = arith.constant 0 : index
    %c0_11 = arith.constant 0 : index
    %14 = vector.load %arg6[%c0_10, %c0_11] : memref<128x256xf32, #tpu.memory_space<vmem>>, vector<128x128xf32>
    tpu.vector_store %arg6[%c0_10, %c0_11], %13 {strides = array<i32>} : memref<128x256xf32, #tpu.memory_space<vmem>>, vector<128x128xf32>,
    %c0_12 = arith.constant 0 : index
    %c0_13 = arith.constant 0 : index
    %15 = vector.load %arg1[%c0_12, %c0_13] : memref<128x64xbf16, #tpu.memory_space<vmem>>, vector<128x64xbf16>
    %c1_14 = arith.constant 1 : index
    %c0_15 = arith.constant 0 : index
    %c0_16 = arith.constant 0 : index
    %16 = vector.load %arg0[%c1_14, %c0_15, %c0_16] : memref<2x64x128xf32, #tpu.memory_space<vmem>>, vector<1x64x128xf32>
    %17 = vector.shape_cast %16 : vector<1x64x128xf32> to vector<64x128xf32>
    %18 = arith.truncf %17 : vector<64x128xf32> to vector<64x128xbf16>
    %cst_17 = arith.constant dense<0.000000e+00> : vector<128x128xf32>
    %19 = tpu.matmul %15, %18, %cst_17 {dimension_numbers = #tpu.dot_dimension_numbers<[1], [0], [0], [1], [0, 0, 1, 1], [], []>} : vector<128x64xbf16>, vector<64x128xbf16>, vector<128x128xf32> -> vector<128x128xf32>
    %c0_18 = arith.constant 0 : index
    %c128 = arith.constant 128 : index
    %20 = vector.load %arg6[%c0_18, %c128] : memref<128x256xf32, #tpu.memory_space<vmem>>, vector<128x128xf32>
    tpu.vector_store %arg6[%c0_18, %c128], %19 {strides = array<i32>} : memref<128x256xf32, #tpu.memory_space<vmem>>, vector<128x128xf32>,
    %c0_19 = arith.constant 0 : index
    %c0_20 = arith.constant 0 : index
    %21 = vector.load %arg6[%c0_19, %c0_20] : memref<128x256xf32, #tpu.memory_space<vmem>>, vector<128x256xf32>
    %cst_21 = arith.constant dense<0.000000e+00> : vector<128xf32>
    %22 = vector.multi_reduction <add>, %21, %cst_21 [1] : vector<128x256xf32> to vector<128xf32>
    %23 = vector.shape_cast %22 : vector<128xf32> to vector<128x1xf32>
    %cst_22 = arith.constant 3.906250e-03 : f32
    %24 = vector.broadcast %cst_22 : f32 to vector<128x1xf32>
    %25 = arith.mulf %23, %24 : vector<128x1xf32>
    %26 = vector.broadcast %25 : vector<128x1xf32> to vector<128x256xf32>
    %27 = arith.subf %21, %26 : vector<128x256xf32>
    %28 = arith.mulf %27, %27 : vector<128x256xf32>
    %cst_23 = arith.constant dense<0.000000e+00> : vector<128xf32>
    %29 = vector.multi_reduction <add>, %28, %cst_23 [1] : vector<128x256xf32> to vector<128xf32>
    %30 = vector.shape_cast %29 : vector<128xf32> to vector<128x1xf32>
    %cst_24 = arith.constant 3.906250e-03 : f32
    %31 = vector.broadcast %cst_24 : f32 to vector<128x1xf32>
    %32 = arith.mulf %30, %31 : vector<128x1xf32>
    %cst_25 = arith.constant 9.99999974E-6 : f32
    %33 = vector.broadcast %cst_25 : f32 to vector<128x1xf32>
    %34 = arith.addf %32, %33 : vector<128x1xf32>
    %35 = math.rsqrt %34 : vector<128x1xf32>
    %36 = arith.mulf %4, %35 : vector<128x1xf32>
    %37 = arith.mulf %25, %36 : vector<128x1xf32>
    %38 = arith.subf %5, %37 : vector<128x1xf32>
    %39 = vector.broadcast %36 : vector<128x1xf32> to vector<128x256xf32>
    %40 = arith.mulf %21, %39 : vector<128x256xf32>
    %41 = vector.broadcast %38 : vector<128x1xf32> to vector<128x256xf32>
    %42 = arith.addf %40, %41 : vector<128x256xf32>
    %cst_26 = arith.constant 0.000000e+00 : f32
    %43 = vector.broadcast %cst_26 : f32 to vector<128x256xf32>
    %44 = arith.maximumf %42, %43 : vector<128x256xf32>
    %c0_i32_27 = arith.constant 0 : i32
    %45 = tpu.memref_slice %arg9[%c0_i32_27] : memref<2x!tpu.dma_semaphore, #tpu.memory_space<semaphore_mem>> -> memref<1x!tpu.dma_semaphore, #tpu.memory_space<semaphore_mem>>
    %46 = tpu.memref_squeeze %45 : memref<1x!tpu.dma_semaphore, #tpu.memory_space<semaphore_mem>> -> memref<!tpu.dma_semaphore, #tpu.memory_space<semaphore_mem>>
    tpu.wait_dma2 semaphore(%46 : memref<!tpu.dma_semaphore, #tpu.memory_space<semaphore_mem>>) src(%arg3 : memref<128x128xbf16, #tpu.memory_space<any>>) dst(%arg7 : memref<128x128xbf16, #tpu.memory_space<vmem>>)
    %c0_28 = arith.constant 0 : index
    %c0_29 = arith.constant 0 : index
    %47 = vector.load %arg7[%c0_28, %c0_29] : memref<128x128xbf16, #tpu.memory_space<vmem>>, vector<128x128xbf16>
    %48 = arith.truncf %44 : vector<128x256xf32> to vector<128x256xbf16>
    %cst_30 = arith.constant dense<0.000000e+00> : vector<128x256xf32>
    %49 = tpu.matmul %47, %48, %cst_30 {dimension_numbers = #tpu.dot_dimension_numbers<[1], [0], [0], [1], [0, 0, 1, 1], [], []>} : vector<128x128xbf16>, vector<128x256xbf16>, vector<128x256xf32> -> vector<128x256xf32>
    %cst_31 = arith.constant dense<0.000000e+00> : vector<128xf32>
    %50 = vector.multi_reduction <add>, %49, %cst_31 [1] : vector<128x256xf32> to vector<128xf32>
    %51 = vector.shape_cast %50 : vector<128xf32> to vector<128x1xf32>
    %cst_32 = arith.constant 3.906250e-03 : f32
    %52 = vector.broadcast %cst_32 : f32 to vector<128x1xf32>
    %53 = arith.mulf %51, %52 : vector<128x1xf32>
    %54 = vector.broadcast %53 : vector<128x1xf32> to vector<128x256xf32>
    %55 = arith.subf %49, %54 : vector<128x256xf32>
    %56 = arith.mulf %55, %55 : vector<128x256xf32>
    %cst_33 = arith.constant dense<0.000000e+00> : vector<128xf32>
    %57 = vector.multi_reduction <add>, %56, %cst_33 [1] : vector<128x256xf32> to vector<128xf32>
    %58 = vector.shape_cast %57 : vector<128xf32> to vector<128x1xf32>
    %cst_34 = arith.constant 3.906250e-03 : f32
    %59 = vector.broadcast %cst_34 : f32 to vector<128x1xf32>
    %60 = arith.mulf %58, %59 : vector<128x1xf32>
    %cst_35 = arith.constant 9.99999974E-6 : f32
    %61 = vector.broadcast %cst_35 : f32 to vector<128x1xf32>
    %62 = arith.addf %60, %61 : vector<128x1xf32>
    %63 = math.rsqrt %62 : vector<128x1xf32>
    %64 = arith.mulf %6, %63 : vector<128x1xf32>
    %65 = arith.mulf %53, %64 : vector<128x1xf32>
    %66 = arith.subf %7, %65 : vector<128x1xf32>
    %67 = vector.broadcast %64 : vector<128x1xf32> to vector<128x256xf32>
    %68 = arith.mulf %49, %67 : vector<128x256xf32>
    %69 = vector.broadcast %66 : vector<128x1xf32> to vector<128x256xf32>
    %70 = arith.addf %68, %69 : vector<128x256xf32>
    %cst_36 = arith.constant 0.000000e+00 : f32
    %71 = vector.broadcast %cst_36 : f32 to vector<128x256xf32>
    %72 = arith.maximumf %70, %71 : vector<128x256xf32>
    %c1_i32_37 = arith.constant 1 : i32
    %73 = tpu.memref_slice %arg9[%c1_i32_37] : memref<2x!tpu.dma_semaphore, #tpu.memory_space<semaphore_mem>> -> memref<1x!tpu.dma_semaphore, #tpu.memory_space<semaphore_mem>>
    %74 = tpu.memref_squeeze %73 : memref<1x!tpu.dma_semaphore, #tpu.memory_space<semaphore_mem>> -> memref<!tpu.dma_semaphore, #tpu.memory_space<semaphore_mem>>
    tpu.wait_dma2 semaphore(%74 : memref<!tpu.dma_semaphore, #tpu.memory_space<semaphore_mem>>) src(%arg4 : memref<32x128xbf16, #tpu.memory_space<any>>) dst(%arg8 : memref<32x128xbf16, #tpu.memory_space<vmem>>)
    %c0_38 = arith.constant 0 : index
    %c0_39 = arith.constant 0 : index
    %75 = vector.load %arg8[%c0_38, %c0_39] : memref<32x128xbf16, #tpu.memory_space<vmem>>, vector<32x128xbf16>
    %76 = arith.truncf %72 : vector<128x256xf32> to vector<128x256xbf16>
    %cst_40 = arith.constant dense<0.000000e+00> : vector<32x256xf32>
    %77 = tpu.matmul %75, %76, %cst_40 {dimension_numbers = #tpu.dot_dimension_numbers<[1], [0], [0], [1], [0, 0, 1, 1], [], []>} : vector<32x128xbf16>, vector<128x256xbf16>, vector<32x256xf32> -> vector<32x256xf32>
    %78 = vector.broadcast %8 : vector<32x1xf32> to vector<32x256xf32>
    %79 = arith.addf %77, %78 : vector<32x256xf32>
    %80 = vector.extract_strided_slice %79 {offsets = [0, 0], sizes = [32, 128], strides = [1, 1]} : vector<32x256xf32> to vector<32x128xf32>
    %c0_41 = arith.constant 0 : index
    %c0_42 = arith.constant 0 : index
    %c0_43 = arith.constant 0 : index
    %81 = vector.load %arg5[%c0_41, %c0_42, %c0_43] : memref<2x32x128xf32, #tpu.memory_space<vmem>>, vector<1x32x128xf32>
    %82 = vector.shape_cast %81 : vector<1x32x128xf32> to vector<32x128xf32>
    %83 = vector.shape_cast %80 : vector<32x128xf32> to vector<1x32x128xf32>
    tpu.vector_store %arg5[%c0_41, %c0_42, %c0_43], %83 {strides = array<i32>} : memref<2x32x128xf32, #tpu.memory_space<vmem>>, vector<1x32x128xf32>,
    %84 = vector.extract_strided_slice %79 {offsets = [0, 128], sizes = [32, 128], strides = [1, 1]} : vector<32x256xf32> to vector<32x128xf32>
    %c1_44 = arith.constant 1 : index
    %c0_45 = arith.constant 0 : index
    %c0_46 = arith.constant 0 : index
    %85 = vector.load %arg5[%c1_44, %c0_45, %c0_46] : memref<2x32x128xf32, #tpu.memory_space<vmem>>, vector<1x32x128xf32>
    %86 = vector.shape_cast %85 : vector<1x32x128xf32> to vector<32x128xf32>
    %87 = vector.shape_cast %84 : vector<32x128xf32> to vector<1x32x128xf32>
    tpu.vector_store %arg5[%c1_44, %c0_45, %c0_46], %87 {strides = array<i32>} : memref<2x32x128xf32, #tpu.memory_space<vmem>>, vector<1x32x128xf32>,
    return
  }
}

</mosaic_0001>

<llo_original>
// kernel: tpu_custom_call.1
$region0: #{tpu_custom_call.1}
  #allocation0 [shape = 'u32[]', space=smem, size = 0x4, offset = 0x4, fixed_abs, tag = 'smem constant byte address 0x4 - core index']
  #allocation1 [shape = 'u32[144,128]{1,0:T(1,128)}', space=vmem, size = 0x12000, scoped, tag = 'internal scratch']
  #allocation2 [shape = 'f32[128,256]{1,0:T(8,128)}', space=vmem, size = 0x20000, scoped, tag = 'scratch operand']
  #allocation3 [shape = 'bf16[128,128]{1,0:T(16,128)(2,1)}', space=vmem, size = 0x8000, scoped, tag = 'scratch operand']
  #allocation4 [shape = 'bf16[32,128]{1,0:T(16,128)(2,1)}', space=vmem, size = 0x2000, scoped, tag = 'scratch operand']
  #allocation5 [shape = 's32[2]{0}', space=sflag, size = 0x8, scoped, tag = 'scratch operand']
  #allocation8 [shape = 's32[]', space=sflag, size = 0x4, offset = 0, fixed_abs, tag = 'sflag constant byte address 0x0 - dummy sync flag']
  #allocation9 [shape = 's32[]', space=sflag, size = 0x4, offset = 0, fixed_abs, tag = 'sflag constant byte address 0x0 - dummy sync flag']
  %s0 = inlined_call_operand.vmem [shape: f32[2,64,128], index: 0, kind: input, shape index: {}]
  %s1 = inlined_call_operand.vmem [shape: bf16[128,64], index: 1, kind: input, shape index: {}]
  %s2 = inlined_call_operand.vmem [shape: f32[128,8], index: 2, kind: input, shape index: {}]
  %s3 = inlined_call_operand.vmem [shape: bf16[128,128], index: 3, kind: input, shape index: {}]
  %s4 = inlined_call_operand.vmem [shape: bf16[32,128], index: 4, kind: input, shape index: {}]
  %s5 = inlined_call_operand.hbm [shape: f32[2,32,128], index: 5, kind: output, shape index: {}]
  %s6 = sld [smem:[#allocation0]]
  $region90: #{tpu_custom_call.1} parent=0
    _
  %s8 = ssub.s32 1, %s6
  %s9 = scalar_select 0, %s8, %s6
  $region1: #{tpu_custom_call.1} parent=0
    #allocation6 [shape = 'u8[32768]{0}', space=vmem, size = 0x8000, scoped, tag = 'output window, operand 0, single buffered']
    #allocation7 [shape = 's32[1]{0}', space=sflag, size = 0x4, scoped, tag = 'scoped memory for tpu_custom_call.1']
    %10 = vsyncpa [#allocation7], 0
    // Predicated region
    $region2: #{tpu_custom_call.1} parent=1 // pred_check
      _
    $region3: #{tpu_custom_call.1} parent=1 // pred_check_branch
      %12 = sbr.rel (0) target = $region5
    $region4: #{tpu_custom_call.1} parent=1 // pred_region
      _
    $region5: #{tpu_custom_call.1} parent=1 // pred_fallthru
      _
    // Predicated region
    $region6: #{tpu_custom_call.1} parent=1 // pred_check
      _
    $region7: #{tpu_custom_call.1} parent=1 // pred_check_branch
      %14 = sbr.rel (0) target = $region9
    $region8: #{tpu_custom_call.1} parent=1 // pred_region
      _
    $region9: #{tpu_custom_call.1} parent=1 // pred_fallthru
      _
    // Predicated region
    $region10: #{tpu_custom_call.1} parent=1 // pred_check
      _
    $region11: #{tpu_custom_call.1} parent=1 // pred_check_branch
      %16 = sbr.rel (0) target = $region13
    $region12: #{tpu_custom_call.1} parent=1 // pred_region
      _
    $region13: #{tpu_custom_call.1} parent=1 // pred_fallthru
      _
    %p19 = scmp.lt.u32.totalorder 64, 8
    %p20 = pneg %p19
    // Predicated region
    $region14: #{tpu_custom_call.1} parent=1 // pred_check
      _
    $region15: #{tpu_custom_call.1} parent=1 // pred_check_branch
      %22 = sbr.rel (%p19) target = $region17
    $region16: #{tpu_custom_call.1} parent=1 // pred_region
      %s37 = sand.u32 64, 7
      %p38 = scmp.eq.s32.totalorder %s37, 0
      // Predicated region
      $region29: #{tpu_custom_call.1} parent=16 // pred_check
        %p39 = pneg %p38
      $region30: #{tpu_custom_call.1} parent=16 // pred_check_branch
        %41 = sbr.rel (%p39) target = $region32
      $region31: #{tpu_custom_call.1} parent=16 // pred_region
        loop: start=0, step=1, limit=1
        $region33: #{tpu_custom_call.1} parent=31 // loop_pre_header
          _
        $region34: #{tpu_custom_call.1} parent=31 // loop_header
          %s43 = sphi 0, %s47
          %p44 = scmp.ge.s32.totalorder %s43, 1
          %s48 = sphi %s3, %s3
          %s49 = sphi [#allocation3], [#allocation3]
        $region35: #{tpu_custom_call.1} parent=31 // loop_header_branch
          %46 = sbr.rel (%p44) target = $region39
        $region36: #{tpu_custom_call.1} parent=31 // loop_body
          %v50 = vld [vmem:[%s48] sm:$0xff]
          %51 = vst [vmem:[%s49] sm:$0xff] %v50
          %v52 = vld [vmem:[%s48 + $0x8] sm:$0xff]
          %53 = vst [vmem:[%s49 + $0x8] sm:$0xff] %v52
          %v54 = vld [vmem:[%s48 + $0x10] sm:$0xff]
          %55 = vst [vmem:[%s49 + $0x10] sm:$0xff] %v54
          %v56 = vld [vmem:[%s48 + $0x18] sm:$0xff]
          %57 = vst [vmem:[%s49 + $0x18] sm:$0xff] %v56
          %v58 = vld [vmem:[%s48 + $0x20] sm:$0xff]
          %59 = vst [vmem:[%s49 + $0x20] sm:$0xff] %v58
          %v60 = vld [vmem:[%s48 + $0x28] sm:$0xff]
          %61 = vst [vmem:[%s49 + $0x28] sm:$0xff] %v60
          %v62 = vld [vmem:[%s48 + $0x30] sm:$0xff]
          %63 = vst [vmem:[%s49 + $0x30] sm:$0xff] %v62
          %v64 = vld [vmem:[%s48 + $0x38] sm:$0xff]
          %65 = vst [vmem:[%s49 + $0x38] sm:$0xff] %v64
        $region37: #{tpu_custom_call.1} parent=31 // loop_footer
          %s47 = sadd.s32 1, %s43
        $region38: #{tpu_custom_call.1} parent=31 // loop_footer_branch
          %42 = sbr.rel target = $region34
        $region39: #{tpu_custom_call.1} parent=31 // loop_exit
          _
      $region32: #{tpu_custom_call.1} parent=16 // pred_fallthru
        _
      %p66 = pneg %p38
      // Predicated region
      $region40: #{tpu_custom_call.1} parent=16 // pred_check
        _
      $region41: #{tpu_custom_call.1} parent=16 // pred_check_branch
        %68 = sbr.rel (%p38) target = $region43
      $region42: #{tpu_custom_call.1} parent=16 // pred_region
        %s69 = sand.u32 64, 7
      $region43: #{tpu_custom_call.1} parent=16 // pred_fallthru
        _
    $region17: #{tpu_custom_call.1} parent=1 // pred_fallthru
      _
    // Predicated region
    $region18: #{tpu_custom_call.1} parent=1 // pred_check
      %p23 = pneg %p19
    $region19: #{tpu_custom_call.1} parent=1 // pred_check_branch
      %25 = sbr.rel (%p23) target = $region21
    $region20: #{tpu_custom_call.1} parent=1 // pred_region
      %s26 = sshllo.u32 0, 64
      loop: start=0, step=1, limit=1
      $region22: #{tpu_custom_call.1} parent=20 // loop_pre_header
        _
      $region23: #{tpu_custom_call.1} parent=20 // loop_header
        %s28 = sphi 0, %s32
        %p29 = scmp.ge.s32.totalorder %s28, 1
        %s33 = sphi %s3, %s3
        %s34 = sphi [#allocation3], [#allocation3]
      $region24: #{tpu_custom_call.1} parent=20 // loop_header_branch
        %31 = sbr.rel (%p29) target = $region28
      $region25: #{tpu_custom_call.1} parent=20 // loop_body
        %v35 = vld [vmem:[%s33] sm:%s26]
        %36 = vst [vmem:[%s34] sm:%s26] %v35
      $region26: #{tpu_custom_call.1} parent=20 // loop_footer
        %s32 = sadd.s32 1, %s28
      $region27: #{tpu_custom_call.1} parent=20 // loop_footer_branch
        %27 = sbr.rel target = $region23
      $region28: #{tpu_custom_call.1} parent=20 // loop_exit
        _
    $region21: #{tpu_custom_call.1} parent=1 // pred_fallthru
      _
    // Predicated region
    $region44: #{tpu_custom_call.1} parent=1 // pred_check
      _
    $region45: #{tpu_custom_call.1} parent=1 // pred_check_branch
      %72 = sbr.rel (0) target = $region47
    $region46: #{tpu_custom_call.1} parent=1 // pred_region
      %73 = vsyncadd [#allocation5], 1024
    $region47: #{tpu_custom_call.1} parent=1 // pred_fallthru
      _
    %s74 = scalar_lea.sflag [#allocation5], 1
    %p76 = scmp.lt.u32.totalorder 16, 8
    %p77 = pneg %p76
    // Predicated region
    $region48: #{tpu_custom_call.1} parent=1 // pred_check
      _
    $region49: #{tpu_custom_call.1} parent=1 // pred_check_branch
      %79 = sbr.rel (%p76) target = $region51
    $region50: #{tpu_custom_call.1} parent=1 // pred_region
      %s94 = sand.u32 16, 7
      %p95 = scmp.eq.s32.totalorder %s94, 0
      // Predicated region
      $region63: #{tpu_custom_call.1} parent=50 // pred_check
        %p96 = pneg %p95
      $region64: #{tpu_custom_call.1} parent=50 // pred_check_branch
        %98 = sbr.rel (%p96) target = $region66
      $region65: #{tpu_custom_call.1} parent=50 // pred_region
        loop: start=0, step=1, limit=1
        $region67: #{tpu_custom_call.1} parent=65 // loop_pre_header
          _
        $region68: #{tpu_custom_call.1} parent=65 // loop_header
          %s100 = sphi 0, %s104
          %p101 = scmp.ge.s32.totalorder %s100, 1
          %s105 = sphi %s4, %s4
          %s106 = sphi [#allocation4], [#allocation4]
        $region69: #{tpu_custom_call.1} parent=65 // loop_header_branch
          %103 = sbr.rel (%p101) target = $region73
        $region70: #{tpu_custom_call.1} parent=65 // loop_body
          %v107 = vld [vmem:[%s105] sm:$0xff]
          %108 = vst [vmem:[%s106] sm:$0xff] %v107
          %v109 = vld [vmem:[%s105 + $0x8] sm:$0xff]
          %110 = vst [vmem:[%s106 + $0x8] sm:$0xff] %v109
        $region71: #{tpu_custom_call.1} parent=65 // loop_footer
          %s104 = sadd.s32 1, %s100
        $region72: #{tpu_custom_call.1} parent=65 // loop_footer_branch
          %99 = sbr.rel target = $region68
        $region73: #{tpu_custom_call.1} parent=65 // loop_exit
          _
      $region66: #{tpu_custom_call.1} parent=50 // pred_fallthru
        _
      %p111 = pneg %p95
      // Predicated region
      $region74: #{tpu_custom_call.1} parent=50 // pred_check
        _
      $region75: #{tpu_custom_call.1} parent=50 // pred_check_branch
        %113 = sbr.rel (%p95) target = $region77
      $region76: #{tpu_custom_call.1} parent=50 // pred_region
        %s114 = sand.u32 16, 7
      $region77: #{tpu_custom_call.1} parent=50 // pred_fallthru
        _
    $region51: #{tpu_custom_call.1} parent=1 // pred_fallthru
      _
    // Predicated region
    $region52: #{tpu_custom_call.1} parent=1 // pred_check
      %p80 = pneg %p76
    $region53: #{tpu_custom_call.1} parent=1 // pred_check_branch
      %82 = sbr.rel (%p80) target = $region55
    $region54: #{tpu_custom_call.1} parent=1 // pred_region
      %s83 = sshllo.u32 0, 16
      loop: start=0, step=1, limit=1
      $region56: #{tpu_custom_call.1} parent=54 // loop_pre_header
        _
      $region57: #{tpu_custom_call.1} parent=54 // loop_header
        %s85 = sphi 0, %s89
        %p86 = scmp.ge.s32.totalorder %s85, 1
        %s90 = sphi %s4, %s4
        %s91 = sphi [#allocation4], [#allocation4]
      $region58: #{tpu_custom_call.1} parent=54 // loop_header_branch
        %88 = sbr.rel (%p86) target = $region62
      $region59: #{tpu_custom_call.1} parent=54 // loop_body
        %v92 = vld [vmem:[%s90] sm:%s83]
        %93 = vst [vmem:[%s91] sm:%s83] %v92
      $region60: #{tpu_custom_call.1} parent=54 // loop_footer
        %s89 = sadd.s32 1, %s85
      $region61: #{tpu_custom_call.1} parent=54 // loop_footer_branch
        %84 = sbr.rel target = $region57
      $region62: #{tpu_custom_call.1} parent=54 // loop_exit
        _
    $region55: #{tpu_custom_call.1} parent=1 // pred_fallthru
      _
    // Predicated region
    $region78: #{tpu_custom_call.1} parent=1 // pred_check
      _
    $region79: #{tpu_custom_call.1} parent=1 // pred_check_branch
      %117 = sbr.rel (0) target = $region81
    $region80: #{tpu_custom_call.1} parent=1 // pred_region
      %118 = vsyncadd %s74, 256
    $region81: #{tpu_custom_call.1} parent=1 // pred_fallthru
      _
    %v119 = vld [vmem:[%s2] sm:$0xff]
    %v120 = vld [vmem:[%s2 + $0x8] sm:$0xff]
    %v121 = vld [vmem:[%s2 + $0x10] sm:$0xff]
    %v122 = vld [vmem:[%s2 + $0x18] sm:$0xff]
    %v123 = vld [vmem:[%s2 + $0x20] sm:$0xff]
    %v124 = vld [vmem:[%s2 + $0x28] sm:$0xff]
    %v125 = vld [vmem:[%s2 + $0x30] sm:$0xff]
    %v126 = vld [vmem:[%s2 + $0x38] sm:$0xff]
    %v127 = vld [vmem:[%s2 + $0x40] sm:$0xff]
    %v128 = vld [vmem:[%s2 + $0x48] sm:$0xff]
    %v129 = vld [vmem:[%s2 + $0x50] sm:$0xff]
    %v130 = vld [vmem:[%s2 + $0x58] sm:$0xff]
    %v131 = vld [vmem:[%s2 + $0x60] sm:$0xff]
    %v132 = vld [vmem:[%s2 + $0x68] sm:$0xff]
    %v133 = vld [vmem:[%s2 + $0x70] sm:$0xff]
    %v134 = vld [vmem:[%s2 + $0x78] sm:$0xff]
    %v135 = vld [vmem:[%s1] sm:$0xf]
    %v136 = vld [vmem:[%s1 + $0x4] sm:$0xf]
    %v137 = vld [vmem:[%s1 + $0x8] sm:$0xf]
    %v138 = vld [vmem:[%s1 + $0xc] sm:$0xf]
    %v139 = vld [vmem:[%s1 + $0x10] sm:$0xf]
    %v140 = vld [vmem:[%s1 + $0x14] sm:$0xf]
    %v141 = vld [vmem:[%s1 + $0x18] sm:$0xf]
    %v142 = vld [vmem:[%s1 + $0x1c] sm:$0xf]
    %v143 = vld [vmem:[%s1 + $0x20] sm:$0xf]
    %v144 = vld [vmem:[%s1 + $0x24] sm:$0xf]
    %v145 = vld [vmem:[%s1 + $0x28] sm:$0xf]
    %v146 = vld [vmem:[%s1 + $0x2c] sm:$0xf]
    %v147 = vld [vmem:[%s1 + $0x30] sm:$0xf]
    %v148 = vld [vmem:[%s1 + $0x34] sm:$0xf]
    %v149 = vld [vmem:[%s1 + $0x38] sm:$0xf]
    %v150 = vld [vmem:[%s1 + $0x3c] sm:$0xf]
    %v151 = vld [vmem:[%s0] sm:$0xff]
    %v152 = vld [vmem:[%s0 + $0x8] sm:$0xff]
    %v153 = vld [vmem:[%s0 + $0x10] sm:$0xff]
    %v154 = vld [vmem:[%s0 + $0x18] sm:$0xff]
    %v155 = vld [vmem:[%s0 + $0x20] sm:$0xff]
    %v156 = vld [vmem:[%s0 + $0x28] sm:$0xff]
    %v157 = vld [vmem:[%s0 + $0x30] sm:$0xff]
    %v158 = vld [vmem:[%s0 + $0x38] sm:$0xff]
    %v159 = vpack.c.bf16 %v152, %v151
    %v160 = vpack.c.bf16 %v154, %v153
    %v161 = vpack.c.bf16 %v156, %v155
    %v162 = vpack.c.bf16 %v158, %v157
    %v179 = vunpack.c.l.b16 %v135
    %v180 = vunpack.c.l.b16 %v136
    %v181 = vunpack.c.l.b16 %v137
    %v182 = vunpack.c.l.b16 %v138
    %v183 = vunpack.c.l.b16 %v139
    %v184 = vunpack.c.l.b16 %v140
    %v185 = vunpack.c.l.b16 %v141
    %v186 = vunpack.c.l.b16 %v142
    %v187 = vunpack.c.l.b16 %v143
    %v188 = vunpack.c.l.b16 %v144
    %v189 = vunpack.c.l.b16 %v145
    %v190 = vunpack.c.l.b16 %v146
    %v191 = vunpack.c.l.b16 %v147
    %v192 = vunpack.c.l.b16 %v148
    %v193 = vunpack.c.l.b16 %v149
    %v194 = vunpack.c.l.b16 %v150
    %v195 = vpack.c.b16 %v180, %v179
    %v196 = vpack.c.b16 %v182, %v181
    %v197 = vpack.c.b16 %v184, %v183
    %v198 = vpack.c.b16 %v186, %v185
    %v199 = vpack.c.b16 %v188, %v187
    %v200 = vpack.c.b16 %v190, %v189
    %v201 = vpack.c.b16 %v192, %v191
    %v202 = vpack.c.b16 %v194, %v193
    %vm203 = vcmask 523264
    %v205 = vsel %vm203, %v195, 0
    %v208 = vsel %vm203, %v196, 0
    %v211 = vsel %vm203, %v197, 0
    %v214 = vsel %vm203, %v198, 0
    %v217 = vsel %vm203, %v199, 0
    %v220 = vsel %vm203, %v200, 0
    %v223 = vsel %vm203, %v201, 0
    %v226 = vsel %vm203, %v202, 0
    %228 = vmatprep.subr.bf16.mxu0 0
    %229 = vmatpush1.bf16.msra.mxu0 %v159
    %230 = vmatprep.subr.bf16.mxu0 0
    %231 = vmatpush1.bf16.msra.mxu0 %v160
    %232 = vmatprep.subr.bf16.mxu0 0
    %233 = vmatpush1.bf16.msra.mxu0 %v161
    %234 = vmatprep.subr.bf16.mxu0 0
    %235 = vmatpush1.bf16.msra.mxu0 %v162
    %236 = vmatprep.subr.bf16.mxu0 0
    %237 = vmatpush1.bf16.msra.mxu0 0
    %238 = vmatprep.subr.bf16.mxu0 0
    %239 = vmatpush1.bf16.msra.mxu0 0
    %240 = vmatprep.subr.bf16.mxu0 0
    %241 = vmatpush1.bf16.msra.mxu0 0
    %242 = vmatprep.subr.bf16.mxu0 0
    %243 = vmatpush1.bf16.msra.mxu0 0
    %244 = vmatprep.subr.bf16.mxu0 0
    %245 = vmatpush1.bf16.msra.mxu0 0
    %246 = vmatprep.subr.bf16.mxu0 0
    %247 = vmatpush1.bf16.msra.mxu0 0
    %248 = vmatprep.subr.bf16.mxu0 0
    %249 = vmatpush1.bf16.msra.mxu0 0
    %250 = vmatprep.subr.bf16.mxu0 0
    %251 = vmatpush1.bf16.msra.mxu0 0
    %252 = vmatprep.subr.bf16.mxu0 0
    %253 = vmatpush1.bf16.msra.mxu0 0
    %254 = vmatprep.subr.bf16.mxu0 0
    %255 = vmatpush1.bf16.msra.mxu0 0
    %256 = vmatprep.subr.bf16.mxu0 0
    %257 = vmatpush1.bf16.msra.mxu0 0
    %258 = vmatprep.subr.bf16.mxu0 0
    %259 = vmatpush1.bf16.msra.mxu0 0
    %260 = vmatprep.mubr.bf16.mxu0 0
    %261 = vmatmul.mubr.bf16.gmra.mrb[0].mxu0 %v205
    %v262 = vpop.f32.mrb[0].mxu0
    %v263 = vadd.f32 0.0, %v262
    %v264 = vpop.f32.mrb[0].mxu0
    %v265 = vpop.f32.mrb[0].mxu0
    %v266 = vadd.f32 0.0, %v265
    %v267 = vpop.f32.mrb[0].mxu0
    %268 = vmatprep.mubr.bf16.mxu0 0
    %269 = vmatmul.mubr.bf16.gmra.mrb[0].mxu0 %v208
    %v270 = vpop.f32.mrb[0].mxu0
    %v271 = vadd.f32 0.0, %v270
    %v272 = vpop.f32.mrb[0].mxu0
    %v273 = vpop.f32.mrb[0].mxu0
    %v274 = vadd.f32 0.0, %v273
    %v275 = vpop.f32.mrb[0].mxu0
    %276 = vmatprep.mubr.bf16.mxu0 0
    %277 = vmatmul.mubr.bf16.gmra.mrb[0].mxu0 %v211
    %v278 = vpop.f32.mrb[0].mxu0
    %v279 = vadd.f32 0.0, %v278
    %v280 = vpop.f32.mrb[0].mxu0
    %v281 = vpop.f32.mrb[0].mxu0
    %v282 = vadd.f32 0.0, %v281
    %v283 = vpop.f32.mrb[0].mxu0
    %284 = vmatprep.mubr.bf16.mxu0 0
    %285 = vmatmul.mubr.bf16.gmra.mrb[0].mxu0 %v214
    %v286 = vpop.f32.mrb[0].mxu0
    %v287 = vadd.f32 0.0, %v286
    %v288 = vpop.f32.mrb[0].mxu0
    %v289 = vpop.f32.mrb[0].mxu0
    %v290 = vadd.f32 0.0, %v289
    %v291 = vpop.f32.mrb[0].mxu0
    %292 = vmatprep.mubr.bf16.mxu0 0
    %293 = vmatmul.mubr.bf16.gmra.mrb[0].mxu0 %v217
    %v294 = vpop.f32.mrb[0].mxu0
    %v295 = vadd.f32 0.0, %v294
    %v296 = vpop.f32.mrb[0].mxu0
    %v297 = vpop.f32.mrb[0].mxu0
    %v298 = vadd.f32 0.0, %v297
    %v299 = vpop.f32.mrb[0].mxu0
    %300 = vmatprep.mubr.bf16.mxu0 0
    %301 = vmatmul.mubr.bf16.gmra.mrb[0].mxu0 %v220
    %v302 = vpop.f32.mrb[0].mxu0
    %v303 = vadd.f32 0.0, %v302
    %v304 = vpop.f32.mrb[0].mxu0
    %v305 = vpop.f32.mrb[0].mxu0
    %v306 = vadd.f32 0.0, %v305
    %v307 = vpop.f32.mrb[0].mxu0
    %308 = vmatprep.mubr.bf16.mxu0 0
    %309 = vmatmul.mubr.bf16.gmra.mrb[0].mxu0 %v223
    %v310 = vpop.f32.mrb[0].mxu0
    %v311 = vadd.f32 0.0, %v310
    %v312 = vpop.f32.mrb[0].mxu0
    %v313 = vpop.f32.mrb[0].mxu0
    %v314 = vadd.f32 0.0, %v313
    %v315 = vpop.f32.mrb[0].mxu0
    %316 = vmatprep.mubr.bf16.mxu0 0
    %317 = vmatmul.mubr.bf16.gmra.mrb[0].mxu0 %v226
    %v318 = vpop.f32.mrb[0].mxu0
    %v319 = vadd.f32 0.0, %v318
    %v320 = vpop.f32.mrb[0].mxu0
    %v321 = vpop.f32.mrb[0].mxu0
    %v322 = vadd.f32 0.0, %v321
    %v323 = vpop.f32.mrb[0].mxu0
    %324 = vdwg.mxu0
    %325 = vst [vmem:[#allocation2] sm:$0xff] %v263
    %326 = vst [vmem:[#allocation2 + $0x10] sm:$0xff] %v266
    %327 = vst [vmem:[#allocation2 + $0x20] sm:$0xff] %v271
    %328 = vst [vmem:[#allocation2 + $0x30] sm:$0xff] %v274
    %329 = vst [vmem:[#allocation2 + $0x40] sm:$0xff] %v279
    %330 = vst [vmem:[#allocation2 + $0x50] sm:$0xff] %v282
    %331 = vst [vmem:[#allocation2 + $0x60] sm:$0xff] %v287
    %332 = vst [vmem:[#allocation2 + $0x70] sm:$0xff] %v290
    %333 = vst [vmem:[#allocation2 + $0x80] sm:$0xff] %v295
    %334 = vst [vmem:[#allocation2 + $0x90] sm:$0xff] %v298
    %335 = vst [vmem:[#allocation2 + $0xa0] sm:$0xff] %v303
    %336 = vst [vmem:[#allocation2 + $0xb0] sm:$0xff] %v306
    %337 = vst [vmem:[#allocation2 + $0xc0] sm:$0xff] %v311
    %338 = vst [vmem:[#allocation2 + $0xd0] sm:$0xff] %v314
    %339 = vst [vmem:[#allocation2 + $0xe0] sm:$0xff] %v319
    %340 = vst [vmem:[#allocation2 + $0xf0] sm:$0xff] %v322
    %v341 = vld [vmem:[%s1] sm:$0xf]
    %v342 = vld [vmem:[%s1 + $0x4] sm:$0xf]
    %v343 = vld [vmem:[%s1 + $0x8] sm:$0xf]
    %v344 = vld [vmem:[%s1 + $0xc] sm:$0xf]
    %v345 = vld [vmem:[%s1 + $0x10] sm:$0xf]
    %v346 = vld [vmem:[%s1 + $0x14] sm:$0xf]
    %v347 = vld [vmem:[%s1 + $0x18] sm:$0xf]
    %v348 = vld [vmem:[%s1 + $0x1c] sm:$0xf]
    %v349 = vld [vmem:[%s1 + $0x20] sm:$0xf]
    %v350 = vld [vmem:[%s1 + $0x24] sm:$0xf]
    %v351 = vld [vmem:[%s1 + $0x28] sm:$0xf]
    %v352 = vld [vmem:[%s1 + $0x2c] sm:$0xf]
    %v353 = vld [vmem:[%s1 + $0x30] sm:$0xf]
    %v354 = vld [vmem:[%s1 + $0x34] sm:$0xf]
    %v355 = vld [vmem:[%s1 + $0x38] sm:$0xf]
    %v356 = vld [vmem:[%s1 + $0x3c] sm:$0xf]
    %s357 = scalar_lea.vmem %s0, 64
    %v358 = vld [vmem:[%s357] sm:$0xff]
    %v359 = vld [vmem:[%s357 + $0x8] sm:$0xff]
    %v360 = vld [vmem:[%s357 + $0x10] sm:$0xff]
    %v361 = vld [vmem:[%s357 + $0x18] sm:$0xff]
    %v362 = vld [vmem:[%s357 + $0x20] sm:$0xff]
    %v363 = vld [vmem:[%s357 + $0x28] sm:$0xff]
    %v364 = vld [vmem:[%s357 + $0x30] sm:$0xff]
    %v365 = vld [vmem:[%s357 + $0x38] sm:$0xff]
    %v366 = vpack.c.bf16 %v359, %v358
    %v367 = vpack.c.bf16 %v361, %v360
    %v368 = vpack.c.bf16 %v363, %v362
    %v369 = vpack.c.bf16 %v365, %v364
    %v386 = vunpack.c.l.b16 %v341
    %v387 = vunpack.c.l.b16 %v342
    %v388 = vunpack.c.l.b16 %v343
    %v389 = vunpack.c.l.b16 %v344
    %v390 = vunpack.c.l.b16 %v345
    %v391 = vunpack.c.l.b16 %v346
    %v392 = vunpack.c.l.b16 %v347
    %v393 = vunpack.c.l.b16 %v348
    %v394 = vunpack.c.l.b16 %v349
    %v395 = vunpack.c.l.b16 %v350
    %v396 = vunpack.c.l.b16 %v351
    %v397 = vunpack.c.l.b16 %v352
    %v398 = vunpack.c.l.b16 %v353
    %v399 = vunpack.c.l.b16 %v354
    %v400 = vunpack.c.l.b16 %v355
    %v401 = vunpack.c.l.b16 %v356
    %v402 = vpack.c.b16 %v387, %v386
    %v403 = vpack.c.b16 %v389, %v388
    %v404 = vpack.c.b16 %v391, %v390
    %v405 = vpack.c.b16 %v393, %v392
    %v406 = vpack.c.b16 %v395, %v394
    %v407 = vpack.c.b16 %v397, %v396
    %v408 = vpack.c.b16 %v399, %v398
    %v409 = vpack.c.b16 %v401, %v400
    %v411 = vsel %vm203, %v402, 0
    %v414 = vsel %vm203, %v403, 0
    %v417 = vsel %vm203, %v404, 0
    %v420 = vsel %vm203, %v405, 0
    %v423 = vsel %vm203, %v406, 0
    %v426 = vsel %vm203, %v407, 0
    %v429 = vsel %vm203, %v408, 0
    %v432 = vsel %vm203, %v409, 0
    %434 = vmatprep.subr.bf16.mxu0 0
    %435 = vmatpush1.bf16.msra.mxu0 %v366
    %436 = vmatprep.subr.bf16.mxu0 0
    %437 = vmatpush1.bf16.msra.mxu0 %v367
    %438 = vmatprep.subr.bf16.mxu0 0
    %439 = vmatpush1.bf16.msra.mxu0 %v368
    %440 = vmatprep.subr.bf16.mxu0 0
    %441 = vmatpush1.bf16.msra.mxu0 %v369
    %442 = vmatprep.subr.bf16.mxu0 0
    %443 = vmatpush1.bf16.msra.mxu0 0
    %444 = vmatprep.subr.bf16.mxu0 0
    %445 = vmatpush1.bf16.msra.mxu0 0
    %446 = vmatprep.subr.bf16.mxu0 0
    %447 = vmatpush1.bf16.msra.mxu0 0
    %448 = vmatprep.subr.bf16.mxu0 0
    %449 = vmatpush1.bf16.msra.mxu0 0
    %450 = vmatprep.subr.bf16.mxu0 0
    %451 = vmatpush1.bf16.msra.mxu0 0
    %452 = vmatprep.subr.bf16.mxu0 0
    %453 = vmatpush1.bf16.msra.mxu0 0
    %454 = vmatprep.subr.bf16.mxu0 0
    %455 = vmatpush1.bf16.msra.mxu0 0
    %456 = vmatprep.subr.bf16.mxu0 0
    %457 = vmatpush1.bf16.msra.mxu0 0
    %458 = vmatprep.subr.bf16.mxu0 0
    %459 = vmatpush1.bf16.msra.mxu0 0
    %460 = vmatprep.subr.bf16.mxu0 0
    %461 = vmatpush1.bf16.msra.mxu0 0
    %462 = vmatprep.subr.bf16.mxu0 0
    %463 = vmatpush1.bf16.msra.mxu0 0
    %464 = vmatprep.subr.bf16.mxu0 0
    %465 = vmatpush1.bf16.msra.mxu0 0
    %466 = vmatprep.mubr.bf16.mxu0 0
    %467 = vmatmul.mubr.bf16.gmra.mrb[0].mxu0 %v411
    %v468 = vpop.f32.mrb[0].mxu0
    %v469 = vadd.f32 0.0, %v468
    %v470 = vpop.f32.mrb[0].mxu0
    %v471 = vpop.f32.mrb[0].mxu0
    %v472 = vadd.f32 0.0, %v471
    %v473 = vpop.f32.mrb[0].mxu0
    %474 = vmatprep.mubr.bf16.mxu0 0
    %475 = vmatmul.mubr.bf16.gmra.mrb[0].mxu0 %v414
    %v476 = vpop.f32.mrb[0].mxu0
    %v477 = vadd.f32 0.0, %v476
    %v478 = vpop.f32.mrb[0].mxu0
    %v479 = vpop.f32.mrb[0].mxu0
    %v480 = vadd.f32 0.0, %v479
    %v481 = vpop.f32.mrb[0].mxu0
    %482 = vmatprep.mubr.bf16.mxu0 0
    %483 = vmatmul.mubr.bf16.gmra.mrb[0].mxu0 %v417
    %v484 = vpop.f32.mrb[0].mxu0
    %v485 = vadd.f32 0.0, %v484
    %v486 = vpop.f32.mrb[0].mxu0
    %v487 = vpop.f32.mrb[0].mxu0
    %v488 = vadd.f32 0.0, %v487
    %v489 = vpop.f32.mrb[0].mxu0
    %490 = vmatprep.mubr.bf16.mxu0 0
    %491 = vmatmul.mubr.bf16.gmra.mrb[0].mxu0 %v420
    %v492 = vpop.f32.mrb[0].mxu0
    %v493 = vadd.f32 0.0, %v492
    %v494 = vpop.f32.mrb[0].mxu0
    %v495 = vpop.f32.mrb[0].mxu0
    %v496 = vadd.f32 0.0, %v495
    %v497 = vpop.f32.mrb[0].mxu0
    %498 = vmatprep.mubr.bf16.mxu0 0
    %499 = vmatmul.mubr.bf16.gmra.mrb[0].mxu0 %v423
    %v500 = vpop.f32.mrb[0].mxu0
    %v501 = vadd.f32 0.0, %v500
    %v502 = vpop.f32.mrb[0].mxu0
    %v503 = vpop.f32.mrb[0].mxu0
    %v504 = vadd.f32 0.0, %v503
    %v505 = vpop.f32.mrb[0].mxu0
    %506 = vmatprep.mubr.bf16.mxu0 0
    %507 = vmatmul.mubr.bf16.gmra.mrb[0].mxu0 %v426
    %v508 = vpop.f32.mrb[0].mxu0
    %v509 = vadd.f32 0.0, %v508
    %v510 = vpop.f32.mrb[0].mxu0
    %v511 = vpop.f32.mrb[0].mxu0
    %v512 = vadd.f32 0.0, %v511
    %v513 = vpop.f32.mrb[0].mxu0
    %514 = vmatprep.mubr.bf16.mxu0 0
    %515 = vmatmul.mubr.bf16.gmra.mrb[0].mxu0 %v429
    %v516 = vpop.f32.mrb[0].mxu0
    %v517 = vadd.f32 0.0, %v516
    %v518 = vpop.f32.mrb[0].mxu0
    %v519 = vpop.f32.mrb[0].mxu0
    %v520 = vadd.f32 0.0, %v519
    %v521 = vpop.f32.mrb[0].mxu0
    %522 = vmatprep.mubr.bf16.mxu0 0
    %523 = vmatmul.mubr.bf16.gmra.mrb[0].mxu0 %v432
    %v524 = vpop.f32.mrb[0].mxu0
    %v525 = vadd.f32 0.0, %v524
    %v526 = vpop.f32.mrb[0].mxu0
    %v527 = vpop.f32.mrb[0].mxu0
    %v528 = vadd.f32 0.0, %v527
    %v529 = vpop.f32.mrb[0].mxu0
    %530 = vdwg.mxu0
    %531 = vst [vmem:[#allocation2 + $0x8] sm:$0xff] %v469
    %532 = vst [vmem:[#allocation2 + $0x18] sm:$0xff] %v472
    %533 = vst [vmem:[#allocation2 + $0x28] sm:$0xff] %v477
    %534 = vst [vmem:[#allocation2 + $0x38] sm:$0xff] %v480
    %535 = vst [vmem:[#allocation2 + $0x48] sm:$0xff] %v485
    %536 = vst [vmem:[#allocation2 + $0x58] sm:$0xff] %v488
    %537 = vst [vmem:[#allocation2 + $0x68] sm:$0xff] %v493
    %538 = vst [vmem:[#allocation2 + $0x78] sm:$0xff] %v496
    %539 = vst [vmem:[#allocation2 + $0x88] sm:$0xff] %v501
    %540 = vst [vmem:[#allocation2 + $0x98] sm:$0xff] %v504
    %541 = vst [vmem:[#allocation2 + $0xa8] sm:$0xff] %v509
    %542 = vst [vmem:[#allocation2 + $0xb8] sm:$0xff] %v512
    %543 = vst [vmem:[#allocation2 + $0xc8] sm:$0xff] %v517
    %544 = vst [vmem:[#allocation2 + $0xd8] sm:$0xff] %v520
    %545 = vst [vmem:[#allocation2 + $0xe8] sm:$0xff] %v525
    %546 = vst [vmem:[#allocation2 + $0xf8] sm:$0xff] %v528
    %v547 = vld [vmem:[#allocation2] sm:$0xff]
    %v548 = vld [vmem:[#allocation2 + $0x8] sm:$0xff]
    %v549 = vld [vmem:[#allocation2 + $0x10] sm:$0xff]
    %v550 = vld [vmem:[#allocation2 + $0x18] sm:$0xff]
    %v551 = vld [vmem:[#allocation2 + $0x20] sm:$0xff]
    %v552 = vld [vmem:[#allocation2 + $0x28] sm:$0xff]
    %v553 = vld [vmem:[#allocation2 + $0x30] sm:$0xff]
    %v554 = vld [vmem:[#allocation2 + $0x38] sm:$0xff]
    %v555 = vld [vmem:[#allocation2 + $0x40] sm:$0xff]
    %v556 = vld [vmem:[#allocation2 + $0x48] sm:$0xff]
    %v557 = vld [vmem:[#allocation2 + $0x50] sm:$0xff]
    %v558 = vld [vmem:[#allocation2 + $0x58] sm:$0xff]
    %v559 = vld [vmem:[#allocation2 + $0x60] sm:$0xff]
    %v560 = vld [vmem:[#allocation2 + $0x68] sm:$0xff]
    %v561 = vld [vmem:[#allocation2 + $0x70] sm:$0xff]
    %v562 = vld [vmem:[#allocation2 + $0x78] sm:$0xff]
    %v563 = vld [vmem:[#allocation2 + $0x80] sm:$0xff]
    %v564 = vld [vmem:[#allocation2 + $0x88] sm:$0xff]
    %v565 = vld [vmem:[#allocation2 + $0x90] sm:$0xff]
    %v566 = vld [vmem:[#allocation2 + $0x98] sm:$0xff]
    %v567 = vld [vmem:[#allocation2 + $0xa0] sm:$0xff]
    %v568 = vld [vmem:[#allocation2 + $0xa8] sm:$0xff]
    %v569 = vld [vmem:[#allocation2 + $0xb0] sm:$0xff]
    %v570 = vld [vmem:[#allocation2 + $0xb8] sm:$0xff]
    %v571 = vld [vmem:[#allocation2 + $0xc0] sm:$0xff]
    %v572 = vld [vmem:[#allocation2 + $0xc8] sm:$0xff]
    %v573 = vld [vmem:[#allocation2 + $0xd0] sm:$0xff]
    %v574 = vld [vmem:[#allocation2 + $0xd8] sm:$0xff]
    %v575 = vld [vmem:[#allocation2 + $0xe0] sm:$0xff]
    %v576 = vld [vmem:[#allocation2 + $0xe8] sm:$0xff]
    %v577 = vld [vmem:[#allocation2 + $0xf0] sm:$0xff]
    %v578 = vld [vmem:[#allocation2 + $0xf8] sm:$0xff]
    %v579 = vadd.f32 %v547, %v548
    %580 = vadd.xlane.f32.xlu0 %v579
    %v581 = vpop.xlane.xlu0 %580
    %v582 = vadd.f32 %v549, %v550
    %583 = vadd.xlane.f32.xlu0 %v582
    %v584 = vpop.xlane.xlu0 %583
    %v585 = vadd.f32 %v551, %v552
    %586 = vadd.xlane.f32.xlu0 %v585
    %v587 = vpop.xlane.xlu0 %586
    %v588 = vadd.f32 %v553, %v554
    %589 = vadd.xlane.f32.xlu0 %v588
    %v590 = vpop.xlane.xlu0 %589
    %v591 = vadd.f32 %v555, %v556
    %592 = vadd.xlane.f32.xlu0 %v591
    %v593 = vpop.xlane.xlu0 %592
    %v594 = vadd.f32 %v557, %v558
    %595 = vadd.xlane.f32.xlu0 %v594
    %v596 = vpop.xlane.xlu0 %595
    %v597 = vadd.f32 %v559, %v560
    %598 = vadd.xlane.f32.xlu0 %v597
    %v599 = vpop.xlane.xlu0 %598
    %v600 = vadd.f32 %v561, %v562
    %601 = vadd.xlane.f32.xlu0 %v600
    %v602 = vpop.xlane.xlu0 %601
    %v603 = vadd.f32 %v563, %v564
    %604 = vadd.xlane.f32.xlu0 %v603
    %v605 = vpop.xlane.xlu0 %604
    %v606 = vadd.f32 %v565, %v566
    %607 = vadd.xlane.f32.xlu0 %v606
    %v608 = vpop.xlane.xlu0 %607
    %v609 = vadd.f32 %v567, %v568
    %610 = vadd.xlane.f32.xlu0 %v609
    %v611 = vpop.xlane.xlu0 %610
    %v612 = vadd.f32 %v569, %v570
    %613 = vadd.xlane.f32.xlu0 %v612
    %v614 = vpop.xlane.xlu0 %613
    %v615 = vadd.f32 %v571, %v572
    %616 = vadd.xlane.f32.xlu0 %v615
    %v617 = vpop.xlane.xlu0 %616
    %v618 = vadd.f32 %v573, %v574
    %619 = vadd.xlane.f32.xlu0 %v618
    %v620 = vpop.xlane.xlu0 %619
    %v621 = vadd.f32 %v575, %v576
    %622 = vadd.xlane.f32.xlu0 %v621
    %v623 = vpop.xlane.xlu0 %622
    %v624 = vadd.f32 %v577, %v578
    %625 = vadd.xlane.f32.xlu0 %v624
    %v626 = vpop.xlane.xlu0 %625
    %v627 = vmul.f32 %v581, 0.00390625
    %v628 = vmul.f32 %v584, 0.00390625
    %v629 = vmul.f32 %v587, 0.00390625
    %v630 = vmul.f32 %v590, 0.00390625
    %v631 = vmul.f32 %v593, 0.00390625
    %v632 = vmul.f32 %v596, 0.00390625
    %v633 = vmul.f32 %v599, 0.00390625
    %v634 = vmul.f32 %v602, 0.00390625
    %v635 = vmul.f32 %v605, 0.00390625
    %v636 = vmul.f32 %v608, 0.00390625
    %v637 = vmul.f32 %v611, 0.00390625
    %v638 = vmul.f32 %v614, 0.00390625
    %v639 = vmul.f32 %v617, 0.00390625
    %v640 = vmul.f32 %v620, 0.00390625
    %v641 = vmul.f32 %v623, 0.00390625
    %v642 = vmul.f32 %v626, 0.00390625
    %v643 = vsub.f32 %v547, %v627
    %v644 = vsub.f32 %v548, %v627
    %v645 = vsub.f32 %v549, %v628
    %v646 = vsub.f32 %v550, %v628
    %v647 = vsub.f32 %v551, %v629
    %v648 = vsub.f32 %v552, %v629
    %v649 = vsub.f32 %v553, %v630
    %v650 = vsub.f32 %v554, %v630
    %v651 = vsub.f32 %v555, %v631
    %v652 = vsub.f32 %v556, %v631
    %v653 = vsub.f32 %v557, %v632
    %v654 = vsub.f32 %v558, %v632
    %v655 = vsub.f32 %v559, %v633
    %v656 = vsub.f32 %v560, %v633
    %v657 = vsub.f32 %v561, %v634
    %v658 = vsub.f32 %v562, %v634
    %v659 = vsub.f32 %v563, %v635
    %v660 = vsub.f32 %v564, %v635
    %v661 = vsub.f32 %v565, %v636
    %v662 = vsub.f32 %v566, %v636
    %v663 = vsub.f32 %v567, %v637
    %v664 = vsub.f32 %v568, %v637
    %v665 = vsub.f32 %v569, %v638
    %v666 = vsub.f32 %v570, %v638
    %v667 = vsub.f32 %v571, %v639
    %v668 = vsub.f32 %v572, %v639
    %v669 = vsub.f32 %v573, %v640
    %v670 = vsub.f32 %v574, %v640
    %v671 = vsub.f32 %v575, %v641
    %v672 = vsub.f32 %v576, %v641
    %v673 = vsub.f32 %v577, %v642
    %v674 = vsub.f32 %v578, %v642
    %v675 = vmul.f32 %v643, %v643
    %v676 = vmul.f32 %v644, %v644
    %v677 = vmul.f32 %v645, %v645
    %v678 = vmul.f32 %v646, %v646
    %v679 = vmul.f32 %v647, %v647
    %v680 = vmul.f32 %v648, %v648
    %v681 = vmul.f32 %v649, %v649
    %v682 = vmul.f32 %v650, %v650
    %v683 = vmul.f32 %v651, %v651
    %v684 = vmul.f32 %v652, %v652
    %v685 = vmul.f32 %v653, %v653
    %v686 = vmul.f32 %v654, %v654
    %v687 = vmul.f32 %v655, %v655
    %v688 = vmul.f32 %v656, %v656
    %v689 = vmul.f32 %v657, %v657
    %v690 = vmul.f32 %v658, %v658
    %v691 = vmul.f32 %v659, %v659
    %v692 = vmul.f32 %v660, %v660
    %v693 = vmul.f32 %v661, %v661
    %v694 = vmul.f32 %v662, %v662
    %v695 = vmul.f32 %v663, %v663
    %v696 = vmul.f32 %v664, %v664
    %v697 = vmul.f32 %v665, %v665
    %v698 = vmul.f32 %v666, %v666
    %v699 = vmul.f32 %v667, %v667
    %v700 = vmul.f32 %v668, %v668
    %v701 = vmul.f32 %v669, %v669
    %v702 = vmul.f32 %v670, %v670
    %v703 = vmul.f32 %v671, %v671
    %v704 = vmul.f32 %v672, %v672
    %v705 = vmul.f32 %v673, %v673
    %v706 = vmul.f32 %v674, %v674
    %v707 = vadd.f32 %v675, %v676
    %708 = vadd.xlane.f32.xlu0 %v707
    %v709 = vpop.xlane.xlu0 %708
    %v710 = vadd.f32 %v677, %v678
    %711 = vadd.xlane.f32.xlu0 %v710
    %v712 = vpop.xlane.xlu0 %711
    %v713 = vadd.f32 %v679, %v680
    %714 = vadd.xlane.f32.xlu0 %v713
    %v715 = vpop.xlane.xlu0 %714
    %v716 = vadd.f32 %v681, %v682
    %717 = vadd.xlane.f32.xlu0 %v716
    %v718 = vpop.xlane.xlu0 %717
    %v719 = vadd.f32 %v683, %v684
    %720 = vadd.xlane.f32.xlu0 %v719
    %v721 = vpop.xlane.xlu0 %720
    %v722 = vadd.f32 %v685, %v686
    %723 = vadd.xlane.f32.xlu0 %v722
    %v724 = vpop.xlane.xlu0 %723
    %v725 = vadd.f32 %v687, %v688
    %726 = vadd.xlane.f32.xlu0 %v725
    %v727 = vpop.xlane.xlu0 %726
    %v728 = vadd.f32 %v689, %v690
    %729 = vadd.xlane.f32.xlu0 %v728
    %v730 = vpop.xlane.xlu0 %729
    %v731 = vadd.f32 %v691, %v692
    %732 = vadd.xlane.f32.xlu0 %v731
    %v733 = vpop.xlane.xlu0 %732
    %v734 = vadd.f32 %v693, %v694
    %735 = vadd.xlane.f32.xlu0 %v734
    %v736 = vpop.xlane.xlu0 %735
    %v737 = vadd.f32 %v695, %v696
    %738 = vadd.xlane.f32.xlu0 %v737
    %v739 = vpop.xlane.xlu0 %738
    %v740 = vadd.f32 %v697, %v698
    %741 = vadd.xlane.f32.xlu0 %v740
    %v742 = vpop.xlane.xlu0 %741
    %v743 = vadd.f32 %v699, %v700
    %744 = vadd.xlane.f32.xlu0 %v743
    %v745 = vpop.xlane.xlu0 %744
    %v746 = vadd.f32 %v701, %v702
    %747 = vadd.xlane.f32.xlu0 %v746
    %v748 = vpop.xlane.xlu0 %747
    %v749 = vadd.f32 %v703, %v704
    %750 = vadd.xlane.f32.xlu0 %v749
    %v751 = vpop.xlane.xlu0 %750
    %v752 = vadd.f32 %v705, %v706
    %753 = vadd.xlane.f32.xlu0 %v752
    %v754 = vpop.xlane.xlu0 %753
    %v755 = vmul.f32 %v709, 0.00390625
    %v756 = vmul.f32 %v712, 0.00390625
    %v757 = vmul.f32 %v715, 0.00390625
    %v758 = vmul.f32 %v718, 0.00390625
    %v759 = vmul.f32 %v721, 0.00390625
    %v760 = vmul.f32 %v724, 0.00390625
    %v761 = vmul.f32 %v727, 0.00390625
    %v762 = vmul.f32 %v730, 0.00390625
    %v763 = vmul.f32 %v733, 0.00390625
    %v764 = vmul.f32 %v736, 0.00390625
    %v765 = vmul.f32 %v739, 0.00390625
    %v766 = vmul.f32 %v742, 0.00390625
    %v767 = vmul.f32 %v745, 0.00390625
    %v768 = vmul.f32 %v748, 0.00390625
    %v769 = vmul.f32 %v751, 0.00390625
    %v770 = vmul.f32 %v754, 0.00390625
    %v771 = vadd.f32 %v755, 1e-05
    %v772 = vadd.f32 %v756, 1e-05
    %v773 = vadd.f32 %v757, 1e-05
    %v774 = vadd.f32 %v758, 1e-05
    %v775 = vadd.f32 %v759, 1e-05
    %v776 = vadd.f32 %v760, 1e-05
    %v777 = vadd.f32 %v761, 1e-05
    %v778 = vadd.f32 %v762, 1e-05
    %v779 = vadd.f32 %v763, 1e-05
    %v780 = vadd.f32 %v764, 1e-05
    %v781 = vadd.f32 %v765, 1e-05
    %v782 = vadd.f32 %v766, 1e-05
    %v783 = vadd.f32 %v767, 1e-05
    %v784 = vadd.f32 %v768, 1e-05
    %v785 = vadd.f32 %v769, 1e-05
    %v786 = vadd.f32 %v770, 1e-05
    %v787 = vrsqrt.pop %v771
    %v788 = vrsqrt.pop %v772
    %v789 = vrsqrt.pop %v773
    %v790 = vrsqrt.pop %v774
    %v791 = vrsqrt.pop %v775
    %v792 = vrsqrt.pop %v776
    %v793 = vrsqrt.pop %v777
    %v794 = vrsqrt.pop %v778
    %v795 = vrsqrt.pop %v779
    %v796 = vrsqrt.pop %v780
    %v797 = vrsqrt.pop %v781
    %v798 = vrsqrt.pop %v782
    %v799 = vrsqrt.pop %v783
    %v800 = vrsqrt.pop %v784
    %v801 = vrsqrt.pop %v785
    %v802 = vrsqrt.pop %v786
    %v803 = vmul.f32 %v119, %v787
    %v804 = vmul.f32 %v120, %v788
    %v805 = vmul.f32 %v121, %v789
    %v806 = vmul.f32 %v122, %v790
    %v807 = vmul.f32 %v123, %v791
    %v808 = vmul.f32 %v124, %v792
    %v809 = vmul.f32 %v125, %v793
    %v810 = vmul.f32 %v126, %v794
    %v811 = vmul.f32 %v127, %v795
    %v812 = vmul.f32 %v128, %v796
    %v813 = vmul.f32 %v129, %v797
    %v814 = vmul.f32 %v130, %v798
    %v815 = vmul.f32 %v131, %v799
    %v816 = vmul.f32 %v132, %v800
    %v817 = vmul.f32 %v133, %v801
    %v818 = vmul.f32 %v134, %v802
    %v819 = vmul.f32 %v627, %v803
    %v820 = vmul.f32 %v628, %v804
    %v821 = vmul.f32 %v629, %v805
    %v822 = vmul.f32 %v630, %v806
    %v823 = vmul.f32 %v631, %v807
    %v824 = vmul.f32 %v632, %v808
    %v825 = vmul.f32 %v633, %v809
    %v826 = vmul.f32 %v634, %v810
    %v827 = vmul.f32 %v635, %v811
    %v828 = vmul.f32 %v636, %v812
    %v829 = vmul.f32 %v637, %v813
    %v830 = vmul.f32 %v638, %v814
    %v831 = vmul.f32 %v639, %v815
    %v832 = vmul.f32 %v640, %v816
    %v833 = vmul.f32 %v641, %v817
    %v834 = vmul.f32 %v642, %v818
    %851 = vrot.lane.b32.xlu0 %v819, 1
    %v852 = vpop.permute.xlu0 %851
    %853 = vrot.lane.b32.xlu0 %v820, 1
    %v854 = vpop.permute.xlu0 %853
    %855 = vrot.lane.b32.xlu0 %v821, 1
    %v856 = vpop.permute.xlu0 %855
    %857 = vrot.lane.b32.xlu0 %v822, 1
    %v858 = vpop.permute.xlu0 %857
    %859 = vrot.lane.b32.xlu0 %v823, 1
    %v860 = vpop.permute.xlu0 %859
    %861 = vrot.lane.b32.xlu0 %v824, 1
    %v862 = vpop.permute.xlu0 %861
    %863 = vrot.lane.b32.xlu0 %v825, 1
    %v864 = vpop.permute.xlu0 %863
    %865 = vrot.lane.b32.xlu0 %v826, 1
    %v866 = vpop.permute.xlu0 %865
    %867 = vrot.lane.b32.xlu0 %v827, 1
    %v868 = vpop.permute.xlu0 %867
    %869 = vrot.lane.b32.xlu0 %v828, 1
    %v870 = vpop.permute.xlu0 %869
    %871 = vrot.lane.b32.xlu0 %v829, 1
    %v872 = vpop.permute.xlu0 %871
    %873 = vrot.lane.b32.xlu0 %v830, 1
    %v874 = vpop.permute.xlu0 %873
    %875 = vrot.lane.b32.xlu0 %v831, 1
    %v876 = vpop.permute.xlu0 %875
    %877 = vrot.lane.b32.xlu0 %v832, 1
    %v878 = vpop.permute.xlu0 %877
    %879 = vrot.lane.b32.xlu0 %v833, 1
    %v880 = vpop.permute.xlu0 %879
    %881 = vrot.lane.b32.xlu0 %v834, 1
    %v882 = vpop.permute.xlu0 %881
    %v899 = vsub.f32 %v119, %v852
    %v900 = vsub.f32 %v120, %v854
    %v901 = vsub.f32 %v121, %v856
    %v902 = vsub.f32 %v122, %v858
    %v903 = vsub.f32 %v123, %v860
    %v904 = vsub.f32 %v124, %v862
    %v905 = vsub.f32 %v125, %v864
    %v906 = vsub.f32 %v126, %v866
    %v907 = vsub.f32 %v127, %v868
    %v908 = vsub.f32 %v128, %v870
    %v909 = vsub.f32 %v129, %v872
    %v910 = vsub.f32 %v130, %v874
    %v911 = vsub.f32 %v131, %v876
    %v912 = vsub.f32 %v132, %v878
    %v913 = vsub.f32 %v133, %v880
    %v914 = vsub.f32 %v134, %v882
    %916 = vset.pattern.permute.xlu0 0
    %917 = vperm.xlu0 %916, %v803
    %v918 = vpop.permute.xlu0 %917
    %921 = vset.pattern.permute.xlu0 0
    %922 = vperm.xlu0 %921, %v804
    %v923 = vpop.permute.xlu0 %922
    %926 = vset.pattern.permute.xlu0 0
    %927 = vperm.xlu0 %926, %v805
    %v928 = vpop.permute.xlu0 %927
    %931 = vset.pattern.permute.xlu0 0
    %932 = vperm.xlu0 %931, %v806
    %v933 = vpop.permute.xlu0 %932
    %936 = vset.pattern.permute.xlu0 0
    %937 = vperm.xlu0 %936, %v807
    %v938 = vpop.permute.xlu0 %937
    %941 = vset.pattern.permute.xlu0 0
    %942 = vperm.xlu0 %941, %v808
    %v943 = vpop.permute.xlu0 %942
    %946 = vset.pattern.permute.xlu0 0
    %947 = vperm.xlu0 %946, %v809
    %v948 = vpop.permute.xlu0 %947
    %951 = vset.pattern.permute.xlu0 0
    %952 = vperm.xlu0 %951, %v810
    %v953 = vpop.permute.xlu0 %952
    %956 = vset.pattern.permute.xlu0 0
    %957 = vperm.xlu0 %956, %v811
    %v958 = vpop.permute.xlu0 %957
    %961 = vset.pattern.permute.xlu0 0
    %962 = vperm.xlu0 %961, %v812
    %v963 = vpop.permute.xlu0 %962
    %966 = vset.pattern.permute.xlu0 0
    %967 = vperm.xlu0 %966, %v813
    %v968 = vpop.permute.xlu0 %967
    %971 = vset.pattern.permute.xlu0 0
    %972 = vperm.xlu0 %971, %v814
    %v973 = vpop.permute.xlu0 %972
    %976 = vset.pattern.permute.xlu0 0
    %977 = vperm.xlu0 %976, %v815
    %v978 = vpop.permute.xlu0 %977
    %981 = vset.pattern.permute.xlu0 0
    %982 = vperm.xlu0 %981, %v816
    %v983 = vpop.permute.xlu0 %982
    %986 = vset.pattern.permute.xlu0 0
    %987 = vperm.xlu0 %986, %v817
    %v988 = vpop.permute.xlu0 %987
    %991 = vset.pattern.permute.xlu0 0
    %992 = vperm.xlu0 %991, %v818
    %v993 = vpop.permute.xlu0 %992
    %v995 = vmul.f32 %v547, %v918
    %v996 = vmul.f32 %v548, %v918
    %v997 = vmul.f32 %v549, %v923
    %v998 = vmul.f32 %v550, %v923
    %v999 = vmul.f32 %v551, %v928
    %v1000 = vmul.f32 %v552, %v928
    %v1001 = vmul.f32 %v553, %v933
    %v1002 = vmul.f32 %v554, %v933
    %v1003 = vmul.f32 %v555, %v938
    %v1004 = vmul.f32 %v556, %v938
    %v1005 = vmul.f32 %v557, %v943
    %v1006 = vmul.f32 %v558, %v943
    %v1007 = vmul.f32 %v559, %v948
    %v1008 = vmul.f32 %v560, %v948
    %v1009 = vmul.f32 %v561, %v953
    %v1010 = vmul.f32 %v562, %v953
    %v1011 = vmul.f32 %v563, %v958
    %v1012 = vmul.f32 %v564, %v958
    %v1013 = vmul.f32 %v565, %v963
    %v1014 = vmul.f32 %v566, %v963
    %v1015 = vmul.f32 %v567, %v968
    %v1016 = vmul.f32 %v568, %v968
    %v1017 = vmul.f32 %v569, %v973
    %v1018 = vmul.f32 %v570, %v973
    %v1019 = vmul.f32 %v571, %v978
    %v1020 = vmul.f32 %v572, %v978
    %v1021 = vmul.f32 %v573, %v983
    %v1022 = vmul.f32 %v574, %v983
    %v1023 = vmul.f32 %v575, %v988
    %v1024 = vmul.f32 %v576, %v988
    %v1025 = vmul.f32 %v577, %v993
    %v1026 = vmul.f32 %v578, %v993
    %1028 = vset.pattern.permute.xlu0 1
    %1029 = vperm.xlu0 %1028, %v899
    %v1030 = vpop.permute.xlu0 %1029
    %1033 = vset.pattern.permute.xlu0 1
    %1034 = vperm.xlu0 %1033, %v900
    %v1035 = vpop.permute.xlu0 %1034
    %1038 = vset.pattern.permute.xlu0 1
    %1039 = vperm.xlu0 %1038, %v901
    %v1040 = vpop.permute.xlu0 %1039
    %1043 = vset.pattern.permute.xlu0 1
    %1044 = vperm.xlu0 %1043, %v902
    %v1045 = vpop.permute.xlu0 %1044
    %1048 = vset.pattern.permute.xlu0 1
    %1049 = vperm.xlu0 %1048, %v903
    %v1050 = vpop.permute.xlu0 %1049
    %1053 = vset.pattern.permute.xlu0 1
    %1054 = vperm.xlu0 %1053, %v904
    %v1055 = vpop.permute.xlu0 %1054
    %1058 = vset.pattern.permute.xlu0 1
    %1059 = vperm.xlu0 %1058, %v905
    %v1060 = vpop.permute.xlu0 %1059
    %1063 = vset.pattern.permute.xlu0 1
    %1064 = vperm.xlu0 %1063, %v906
    %v1065 = vpop.permute.xlu0 %1064
    %1068 = vset.pattern.permute.xlu0 1
    %1069 = vperm.xlu0 %1068, %v907
    %v1070 = vpop.permute.xlu0 %1069
    %1073 = vset.pattern.permute.xlu0 1
    %1074 = vperm.xlu0 %1073, %v908
    %v1075 = vpop.permute.xlu0 %1074
    %1078 = vset.pattern.permute.xlu0 1
    %1079 = vperm.xlu0 %1078, %v909
    %v1080 = vpop.permute.xlu0 %1079
    %1083 = vset.pattern.permute.xlu0 1
    %1084 = vperm.xlu0 %1083, %v910
    %v1085 = vpop.permute.xlu0 %1084
    %1088 = vset.pattern.permute.xlu0 1
    %1089 = vperm.xlu0 %1088, %v911
    %v1090 = vpop.permute.xlu0 %1089
    %1093 = vset.pattern.permute.xlu0 1
    %1094 = vperm.xlu0 %1093, %v912
    %v1095 = vpop.permute.xlu0 %1094
    %1098 = vset.pattern.permute.xlu0 1
    %1099 = vperm.xlu0 %1098, %v913
    %v1100 = vpop.permute.xlu0 %1099
    %1103 = vset.pattern.permute.xlu0 1
    %1104 = vperm.xlu0 %1103, %v914
    %v1105 = vpop.permute.xlu0 %1104
    %v1107 = vadd.f32 %v995, %v1030
    %v1108 = vadd.f32 %v996, %v1030
    %v1109 = vadd.f32 %v997, %v1035
    %v1110 = vadd.f32 %v998, %v1035
    %v1111 = vadd.f32 %v999, %v1040
    %v1112 = vadd.f32 %v1000, %v1040
    %v1113 = vadd.f32 %v1001, %v1045
    %v1114 = vadd.f32 %v1002, %v1045
    %v1115 = vadd.f32 %v1003, %v1050
    %v1116 = vadd.f32 %v1004, %v1050
    %v1117 = vadd.f32 %v1005, %v1055
    %v1118 = vadd.f32 %v1006, %v1055
    %v1119 = vadd.f32 %v1007, %v1060
    %v1120 = vadd.f32 %v1008, %v1060
    %v1121 = vadd.f32 %v1009, %v1065
    %v1122 = vadd.f32 %v1010, %v1065
    %v1123 = vadd.f32 %v1011, %v1070
    %v1124 = vadd.f32 %v1012, %v1070
    %v1125 = vadd.f32 %v1013, %v1075
    %v1126 = vadd.f32 %v1014, %v1075
    %v1127 = vadd.f32 %v1015, %v1080
    %v1128 = vadd.f32 %v1016, %v1080
    %v1129 = vadd.f32 %v1017, %v1085
    %v1130 = vadd.f32 %v1018, %v1085
    %v1131 = vadd.f32 %v1019, %v1090
    %v1132 = vadd.f32 %v1020, %v1090
    %v1133 = vadd.f32 %v1021, %v1095
    %v1134 = vadd.f32 %v1022, %v1095
    %v1135 = vadd.f32 %v1023, %v1100
    %v1136 = vadd.f32 %v1024, %v1100
    %v1137 = vadd.f32 %v1025, %v1105
    %v1138 = vadd.f32 %v1026, %v1105
    %v1139 = vmax.f32 %v1107, 0.0
    %v1140 = vmax.f32 %v1108, 0.0
    %v1141 = vmax.f32 %v1109, 0.0
    %v1142 = vmax.f32 %v1110, 0.0
    %v1143 = vmax.f32 %v1111, 0.0
    %v1144 = vmax.f32 %v1112, 0.0
    %v1145 = vmax.f32 %v1113, 0.0
    %v1146 = vmax.f32 %v1114, 0.0
    %v1147 = vmax.f32 %v1115, 0.0
    %v1148 = vmax.f32 %v1116, 0.0
    %v1149 = vmax.f32 %v1117, 0.0
    %v1150 = vmax.f32 %v1118, 0.0
    %v1151 = vmax.f32 %v1119, 0.0
    %v1152 = vmax.f32 %v1120, 0.0
    %v1153 = vmax.f32 %v1121, 0.0
    %v1154 = vmax.f32 %v1122, 0.0
    %v1155 = vmax.f32 %v1123, 0.0
    %v1156 = vmax.f32 %v1124, 0.0
    %v1157 = vmax.f32 %v1125, 0.0
    %v1158 = vmax.f32 %v1126, 0.0
    %v1159 = vmax.f32 %v1127, 0.0
    %v1160 = vmax.f32 %v1128, 0.0
    %v1161 = vmax.f32 %v1129, 0.0
    %v1162 = vmax.f32 %v1130, 0.0
    %v1163 = vmax.f32 %v1131, 0.0
    %v1164 = vmax.f32 %v1132, 0.0
    %v1165 = vmax.f32 %v1133, 0.0
    %v1166 = vmax.f32 %v1134, 0.0
    %v1167 = vmax.f32 %v1135, 0.0
    %v1168 = vmax.f32 %v1136, 0.0
    %v1169 = vmax.f32 %v1137, 0.0
    %v1170 = vmax.f32 %v1138, 0.0
    %s1171 = smul.u32 4, 16
    %s1172 = smul.u32 %s1171, 1
    %s1173 = sshll.u32 %s1172, 4
    %1174 = dma.done [#allocation5], %s1173
    %v1175 = vld [vmem:[#allocation3] sm:$0xff]
    %v1176 = vld [vmem:[#allocation3 + $0x8] sm:$0xff]
    %v1177 = vld [vmem:[#allocation3 + $0x10] sm:$0xff]
    %v1178 = vld [vmem:[#allocation3 + $0x18] sm:$0xff]
    %v1179 = vld [vmem:[#allocation3 + $0x20] sm:$0xff]
    %v1180 = vld [vmem:[#allocation3 + $0x28] sm:$0xff]
    %v1181 = vld [vmem:[#allocation3 + $0x30] sm:$0xff]
    %v1182 = vld [vmem:[#allocation3 + $0x38] sm:$0xff]
    %v1183 = vpack.c.bf16 %v1141, %v1139
    %v1184 = vpack.c.bf16 %v1142, %v1140
    %v1185 = vpack.c.bf16 %v1145, %v1143
    %v1186 = vpack.c.bf16 %v1146, %v1144
    %v1187 = vpack.c.bf16 %v1149, %v1147
    %v1188 = vpack.c.bf16 %v1150, %v1148
    %v1189 = vpack.c.bf16 %v1153, %v1151
    %v1190 = vpack.c.bf16 %v1154, %v1152
    %v1191 = vpack.c.bf16 %v1157, %v1155
    %v1192 = vpack.c.bf16 %v1158, %v1156
    %v1193 = vpack.c.bf16 %v1161, %v1159
    %v1194 = vpack.c.bf16 %v1162, %v1160
    %v1195 = vpack.c.bf16 %v1165, %v1163
    %v1196 = vpack.c.bf16 %v1166, %v1164
    %v1197 = vpack.c.bf16 %v1169, %v1167
    %v1198 = vpack.c.bf16 %v1170, %v1168
    %1199 = vmatprep.subr.bf16.mxu0 %v1184
    %1200 = vmatpush1.bf16.msra.mxu0 %v1183
    %1201 = vmatprep.subr.bf16.mxu0 %v1186
    %1202 = vmatpush1.bf16.msra.mxu0 %v1185
    %1203 = vmatprep.subr.bf16.mxu0 %v1188
    %1204 = vmatpush1.bf16.msra.mxu0 %v1187
    %1205 = vmatprep.subr.bf16.mxu0 %v1190
    %1206 = vmatpush1.bf16.msra.mxu0 %v1189
    %1207 = vmatprep.subr.bf16.mxu0 %v1192
    %1208 = vmatpush1.bf16.msra.mxu0 %v1191
    %1209 = vmatprep.subr.bf16.mxu0 %v1194
    %1210 = vmatpush1.bf16.msra.mxu0 %v1193
    %1211 = vmatprep.subr.bf16.mxu0 %v1196
    %1212 = vmatpush1.bf16.msra.mxu0 %v1195
    %1213 = vmatprep.subr.bf16.mxu0 %v1198
    %1214 = vmatpush1.bf16.msra.mxu0 %v1197
    %1215 = vmatprep.subr.bf16.mxu0 0
    %1216 = vmatpush1.bf16.msra.mxu0 0
    %1217 = vmatprep.subr.bf16.mxu0 0
    %1218 = vmatpush1.bf16.msra.mxu0 0
    %1219 = vmatprep.subr.bf16.mxu0 0
    %1220 = vmatpush1.bf16.msra.mxu0 0
    %1221 = vmatprep.subr.bf16.mxu0 0
    %1222 = vmatpush1.bf16.msra.mxu0 0
    %1223 = vmatprep.subr.bf16.mxu0 0
    %1224 = vmatpush1.bf16.msra.mxu0 0
    %1225 = vmatprep.subr.bf16.mxu0 0
    %1226 = vmatpush1.bf16.msra.mxu0 0
    %1227 = vmatprep.subr.bf16.mxu0 0
    %1228 = vmatpush1.bf16.msra.mxu0 0
    %1229 = vmatprep.subr.bf16.mxu0 0
    %1230 = vmatpush1.bf16.msra.mxu0 0
    %1231 = vmatprep.mubr.bf16.mxu0 0
    %1232 = vmatmul.mubr.bf16.gmra.mrb[0].mxu0 %v1175
    %v1233 = vpop.f32.mrb[0].mxu0
    %v1234 = vadd.f32 0.0, %v1233
    %v1235 = vpop.f32.mrb[0].mxu0
    %v1236 = vadd.f32 0.0, %v1235
    %v1237 = vpop.f32.mrb[0].mxu0
    %v1238 = vadd.f32 0.0, %v1237
    %v1239 = vpop.f32.mrb[0].mxu0
    %v1240 = vadd.f32 0.0, %v1239
    %1241 = vmatprep.mubr.bf16.mxu0 0
    %1242 = vmatmul.mubr.bf16.gmra.mrb[0].mxu0 %v1176
    %v1243 = vpop.f32.mrb[0].mxu0
    %v1244 = vadd.f32 0.0, %v1243
    %v1245 = vpop.f32.mrb[0].mxu0
    %v1246 = vadd.f32 0.0, %v1245
    %v1247 = vpop.f32.mrb[0].mxu0
    %v1248 = vadd.f32 0.0, %v1247
    %v1249 = vpop.f32.mrb[0].mxu0
    %v1250 = vadd.f32 0.0, %v1249
    %1251 = vmatprep.mubr.bf16.mxu0 0
    %1252 = vmatmul.mubr.bf16.gmra.mrb[0].mxu0 %v1177
    %v1253 = vpop.f32.mrb[0].mxu0
    %v1254 = vadd.f32 0.0, %v1253
    %v1255 = vpop.f32.mrb[0].mxu0
    %v1256 = vadd.f32 0.0, %v1255
    %v1257 = vpop.f32.mrb[0].mxu0
    %v1258 = vadd.f32 0.0, %v1257
    %v1259 = vpop.f32.mrb[0].mxu0
    %v1260 = vadd.f32 0.0, %v1259
    %1261 = vmatprep.mubr.bf16.mxu0 0
    %1262 = vmatmul.mubr.bf16.gmra.mrb[0].mxu0 %v1178
    %v1263 = vpop.f32.mrb[0].mxu0
    %v1264 = vadd.f32 0.0, %v1263
    %v1265 = vpop.f32.mrb[0].mxu0
    %v1266 = vadd.f32 0.0, %v1265
    %v1267 = vpop.f32.mrb[0].mxu0
    %v1268 = vadd.f32 0.0, %v1267
    %v1269 = vpop.f32.mrb[0].mxu0
    %v1270 = vadd.f32 0.0, %v1269
    %1271 = vmatprep.mubr.bf16.mxu0 0
    %1272 = vmatmul.mubr.bf16.gmra.mrb[0].mxu0 %v1179
    %v1273 = vpop.f32.mrb[0].mxu0
    %v1274 = vadd.f32 0.0, %v1273
    %v1275 = vpop.f32.mrb[0].mxu0
    %v1276 = vadd.f32 0.0, %v1275
    %v1277 = vpop.f32.mrb[0].mxu0
    %v1278 = vadd.f32 0.0, %v1277
    %v1279 = vpop.f32.mrb[0].mxu0
    %v1280 = vadd.f32 0.0, %v1279
    %1281 = vmatprep.mubr.bf16.mxu0 0
    %1282 = vmatmul.mubr.bf16.gmra.mrb[0].mxu0 %v1180
    %v1283 = vpop.f32.mrb[0].mxu0
    %v1284 = vadd.f32 0.0, %v1283
    %v1285 = vpop.f32.mrb[0].mxu0
    %v1286 = vadd.f32 0.0, %v1285
    %v1287 = vpop.f32.mrb[0].mxu0
    %v1288 = vadd.f32 0.0, %v1287
    %v1289 = vpop.f32.mrb[0].mxu0
    %v1290 = vadd.f32 0.0, %v1289
    %1291 = vmatprep.mubr.bf16.mxu0 0
    %1292 = vmatmul.mubr.bf16.gmra.mrb[0].mxu0 %v1181
    %v1293 = vpop.f32.mrb[0].mxu0
    %v1294 = vadd.f32 0.0, %v1293
    %v1295 = vpop.f32.mrb[0].mxu0
    %v1296 = vadd.f32 0.0, %v1295
    %v1297 = vpop.f32.mrb[0].mxu0
    %v1298 = vadd.f32 0.0, %v1297
    %v1299 = vpop.f32.mrb[0].mxu0
    %v1300 = vadd.f32 0.0, %v1299
    %1301 = vmatprep.mubr.bf16.mxu0 0
    %1302 = vmatmul.mubr.bf16.gmra.mrb[0].mxu0 %v1182
    %v1303 = vpop.f32.mrb[0].mxu0
    %v1304 = vadd.f32 0.0, %v1303
    %v1305 = vpop.f32.mrb[0].mxu0
    %v1306 = vadd.f32 0.0, %v1305
    %v1307 = vpop.f32.mrb[0].mxu0
    %v1308 = vadd.f32 0.0, %v1307
    %v1309 = vpop.f32.mrb[0].mxu0
    %v1310 = vadd.f32 0.0, %v1309
    %1311 = vdwg.mxu0
    %v1312 = vadd.f32 %v1234, %v1236
    %1313 = vadd.xlane.f32.xlu0 %v1312
    %v1314 = vpop.xlane.xlu0 %1313
    %v1315 = vadd.f32 %v1238, %v1240
    %1316 = vadd.xlane.f32.xlu0 %v1315
    %v1317 = vpop.xlane.xlu0 %1316
    %v1318 = vadd.f32 %v1244, %v1246
    %1319 = vadd.xlane.f32.xlu0 %v1318
    %v1320 = vpop.xlane.xlu0 %1319
    %v1321 = vadd.f32 %v1248, %v1250
    %1322 = vadd.xlane.f32.xlu0 %v1321
    %v1323 = vpop.xlane.xlu0 %1322
    %v1324 = vadd.f32 %v1254, %v1256
    %1325 = vadd.xlane.f32.xlu0 %v1324
    %v1326 = vpop.xlane.xlu0 %1325
    %v1327 = vadd.f32 %v1258, %v1260
    %1328 = vadd.xlane.f32.xlu0 %v1327
    %v1329 = vpop.xlane.xlu0 %1328
    %v1330 = vadd.f32 %v1264, %v1266
    %1331 = vadd.xlane.f32.xlu0 %v1330
    %v1332 = vpop.xlane.xlu0 %1331
    %v1333 = vadd.f32 %v1268, %v1270
    %1334 = vadd.xlane.f32.xlu0 %v1333
    %v1335 = vpop.xlane.xlu0 %1334
    %v1336 = vadd.f32 %v1274, %v1276
    %1337 = vadd.xlane.f32.xlu0 %v1336
    %v1338 = vpop.xlane.xlu0 %1337
    %v1339 = vadd.f32 %v1278, %v1280
    %1340 = vadd.xlane.f32.xlu0 %v1339
    %v1341 = vpop.xlane.xlu0 %1340
    %v1342 = vadd.f32 %v1284, %v1286
    %1343 = vadd.xlane.f32.xlu0 %v1342
    %v1344 = vpop.xlane.xlu0 %1343
    %v1345 = vadd.f32 %v1288, %v1290
    %1346 = vadd.xlane.f32.xlu0 %v1345
    %v1347 = vpop.xlane.xlu0 %1346
    %v1348 = vadd.f32 %v1294, %v1296
    %1349 = vadd.xlane.f32.xlu0 %v1348
    %v1350 = vpop.xlane.xlu0 %1349
    %v1351 = vadd.f32 %v1298, %v1300
    %1352 = vadd.xlane.f32.xlu0 %v1351
    %v1353 = vpop.xlane.xlu0 %1352
    %v1354 = vadd.f32 %v1304, %v1306
    %1355 = vadd.xlane.f32.xlu0 %v1354
    %v1356 = vpop.xlane.xlu0 %1355
    %v1357 = vadd.f32 %v1308, %v1310
    %1358 = vadd.xlane.f32.xlu0 %v1357
    %v1359 = vpop.xlane.xlu0 %1358
    %v1360 = vmul.f32 %v1314, 0.00390625
    %v1361 = vmul.f32 %v1317, 0.00390625
    %v1362 = vmul.f32 %v1320, 0.00390625
    %v1363 = vmul.f32 %v1323, 0.00390625
    %v1364 = vmul.f32 %v1326, 0.00390625
    %v1365 = vmul.f32 %v1329, 0.00390625
    %v1366 = vmul.f32 %v1332, 0.00390625
    %v1367 = vmul.f32 %v1335, 0.00390625
    %v1368 = vmul.f32 %v1338, 0.00390625
    %v1369 = vmul.f32 %v1341, 0.00390625
    %v1370 = vmul.f32 %v1344, 0.00390625
    %v1371 = vmul.f32 %v1347, 0.00390625
    %v1372 = vmul.f32 %v1350, 0.00390625
    %v1373 = vmul.f32 %v1353, 0.00390625
    %v1374 = vmul.f32 %v1356, 0.00390625
    %v1375 = vmul.f32 %v1359, 0.00390625
    %v1376 = vsub.f32 %v1234, %v1360
    %v1377 = vsub.f32 %v1236, %v1360
    %v1378 = vsub.f32 %v1238, %v1361
    %v1379 = vsub.f32 %v1240, %v1361
    %v1380 = vsub.f32 %v1244, %v1362
    %v1381 = vsub.f32 %v1246, %v1362
    %v1382 = vsub.f32 %v1248, %v1363
    %v1383 = vsub.f32 %v1250, %v1363
    %v1384 = vsub.f32 %v1254, %v1364
    %v1385 = vsub.f32 %v1256, %v1364
    %v1386 = vsub.f32 %v1258, %v1365
    %v1387 = vsub.f32 %v1260, %v1365
    %v1388 = vsub.f32 %v1264, %v1366
    %v1389 = vsub.f32 %v1266, %v1366
    %v1390 = vsub.f32 %v1268, %v1367
    %v1391 = vsub.f32 %v1270, %v1367
    %v1392 = vsub.f32 %v1274, %v1368
    %v1393 = vsub.f32 %v1276, %v1368
    %v1394 = vsub.f32 %v1278, %v1369
    %v1395 = vsub.f32 %v1280, %v1369
    %v1396 = vsub.f32 %v1284, %v1370
    %v1397 = vsub.f32 %v1286, %v1370
    %v1398 = vsub.f32 %v1288, %v1371
    %v1399 = vsub.f32 %v1290, %v1371
    %v1400 = vsub.f32 %v1294, %v1372
    %v1401 = vsub.f32 %v1296, %v1372
    %v1402 = vsub.f32 %v1298, %v1373
    %v1403 = vsub.f32 %v1300, %v1373
    %v1404 = vsub.f32 %v1304, %v1374
    %v1405 = vsub.f32 %v1306, %v1374
    %v1406 = vsub.f32 %v1308, %v1375
    %v1407 = vsub.f32 %v1310, %v1375
    %v1408 = vmul.f32 %v1376, %v1376
    %v1409 = vmul.f32 %v1377, %v1377
    %v1410 = vmul.f32 %v1378, %v1378
    %v1411 = vmul.f32 %v1379, %v1379
    %v1412 = vmul.f32 %v1380, %v1380
    %v1413 = vmul.f32 %v1381, %v1381
    %v1414 = vmul.f32 %v1382, %v1382
    %v1415 = vmul.f32 %v1383, %v1383
    %v1416 = vmul.f32 %v1384, %v1384
    %v1417 = vmul.f32 %v1385, %v1385
    %v1418 = vmul.f32 %v1386, %v1386
    %v1419 = vmul.f32 %v1387, %v1387
    %v1420 = vmul.f32 %v1388, %v1388
    %v1421 = vmul.f32 %v1389, %v1389
    %v1422 = vmul.f32 %v1390, %v1390
    %v1423 = vmul.f32 %v1391, %v1391
    %v1424 = vmul.f32 %v1392, %v1392
    %v1425 = vmul.f32 %v1393, %v1393
    %v1426 = vmul.f32 %v1394, %v1394
    %v1427 = vmul.f32 %v1395, %v1395
    %v1428 = vmul.f32 %v1396, %v1396
    %v1429 = vmul.f32 %v1397, %v1397
    %v1430 = vmul.f32 %v1398, %v1398
    %v1431 = vmul.f32 %v1399, %v1399
    %v1432 = vmul.f32 %v1400, %v1400
    %v1433 = vmul.f32 %v1401, %v1401
    %v1434 = vmul.f32 %v1402, %v1402
    %v1435 = vmul.f32 %v1403, %v1403
    %v1436 = vmul.f32 %v1404, %v1404
    %v1437 = vmul.f32 %v1405, %v1405
    %v1438 = vmul.f32 %v1406, %v1406
    %v1439 = vmul.f32 %v1407, %v1407
    %v1440 = vadd.f32 %v1408, %v1409
    %1441 = vadd.xlane.f32.xlu0 %v1440
    %v1442 = vpop.xlane.xlu0 %1441
    %v1443 = vadd.f32 %v1410, %v1411
    %1444 = vadd.xlane.f32.xlu0 %v1443
    %v1445 = vpop.xlane.xlu0 %1444
    %v1446 = vadd.f32 %v1412, %v1413
    %1447 = vadd.xlane.f32.xlu0 %v1446
    %v1448 = vpop.xlane.xlu0 %1447
    %v1449 = vadd.f32 %v1414, %v1415
    %1450 = vadd.xlane.f32.xlu0 %v1449
    %v1451 = vpop.xlane.xlu0 %1450
    %v1452 = vadd.f32 %v1416, %v1417
    %1453 = vadd.xlane.f32.xlu0 %v1452
    %v1454 = vpop.xlane.xlu0 %1453
    %v1455 = vadd.f32 %v1418, %v1419
    %1456 = vadd.xlane.f32.xlu0 %v1455
    %v1457 = vpop.xlane.xlu0 %1456
    %v1458 = vadd.f32 %v1420, %v1421
    %1459 = vadd.xlane.f32.xlu0 %v1458
    %v1460 = vpop.xlane.xlu0 %1459
    %v1461 = vadd.f32 %v1422, %v1423
    %1462 = vadd.xlane.f32.xlu0 %v1461
    %v1463 = vpop.xlane.xlu0 %1462
    %v1464 = vadd.f32 %v1424, %v1425
    %1465 = vadd.xlane.f32.xlu0 %v1464
    %v1466 = vpop.xlane.xlu0 %1465
    %v1467 = vadd.f32 %v1426, %v1427
    %1468 = vadd.xlane.f32.xlu0 %v1467
    %v1469 = vpop.xlane.xlu0 %1468
    %v1470 = vadd.f32 %v1428, %v1429
    %1471 = vadd.xlane.f32.xlu0 %v1470
    %v1472 = vpop.xlane.xlu0 %1471
    %v1473 = vadd.f32 %v1430, %v1431
    %1474 = vadd.xlane.f32.xlu0 %v1473
    %v1475 = vpop.xlane.xlu0 %1474
    %v1476 = vadd.f32 %v1432, %v1433
    %1477 = vadd.xlane.f32.xlu0 %v1476
    %v1478 = vpop.xlane.xlu0 %1477
    %v1479 = vadd.f32 %v1434, %v1435
    %1480 = vadd.xlane.f32.xlu0 %v1479
    %v1481 = vpop.xlane.xlu0 %1480
    %v1482 = vadd.f32 %v1436, %v1437
    %1483 = vadd.xlane.f32.xlu0 %v1482
    %v1484 = vpop.xlane.xlu0 %1483
    %v1485 = vadd.f32 %v1438, %v1439
    %1486 = vadd.xlane.f32.xlu0 %v1485
    %v1487 = vpop.xlane.xlu0 %1486
    %v1488 = vmul.f32 %v1442, 0.00390625
    %v1489 = vmul.f32 %v1445, 0.00390625
    %v1490 = vmul.f32 %v1448, 0.00390625
    %v1491 = vmul.f32 %v1451, 0.00390625
    %v1492 = vmul.f32 %v1454, 0.00390625
    %v1493 = vmul.f32 %v1457, 0.00390625
    %v1494 = vmul.f32 %v1460, 0.00390625
    %v1495 = vmul.f32 %v1463, 0.00390625
    %v1496 = vmul.f32 %v1466, 0.00390625
    %v1497 = vmul.f32 %v1469, 0.00390625
    %v1498 = vmul.f32 %v1472, 0.00390625
    %v1499 = vmul.f32 %v1475, 0.00390625
    %v1500 = vmul.f32 %v1478, 0.00390625
    %v1501 = vmul.f32 %v1481, 0.00390625
    %v1502 = vmul.f32 %v1484, 0.00390625
    %v1503 = vmul.f32 %v1487, 0.00390625
    %v1504 = vadd.f32 %v1488, 1e-05
    %v1505 = vadd.f32 %v1489, 1e-05
    %v1506 = vadd.f32 %v1490, 1e-05
    %v1507 = vadd.f32 %v1491, 1e-05
    %v1508 = vadd.f32 %v1492, 1e-05
    %v1509 = vadd.f32 %v1493, 1e-05
    %v1510 = vadd.f32 %v1494, 1e-05
    %v1511 = vadd.f32 %v1495, 1e-05
    %v1512 = vadd.f32 %v1496, 1e-05
    %v1513 = vadd.f32 %v1497, 1e-05
    %v1514 = vadd.f32 %v1498, 1e-05
    %v1515 = vadd.f32 %v1499, 1e-05
    %v1516 = vadd.f32 %v1500, 1e-05
    %v1517 = vadd.f32 %v1501, 1e-05
    %v1518 = vadd.f32 %v1502, 1e-05
    %v1519 = vadd.f32 %v1503, 1e-05
    %v1520 = vrsqrt.pop %v1504
    %v1521 = vrsqrt.pop %v1505
    %v1522 = vrsqrt.pop %v1506
    %v1523 = vrsqrt.pop %v1507
    %v1524 = vrsqrt.pop %v1508
    %v1525 = vrsqrt.pop %v1509
    %v1526 = vrsqrt.pop %v1510
    %v1527 = vrsqrt.pop %v1511
    %v1528 = vrsqrt.pop %v1512
    %v1529 = vrsqrt.pop %v1513
    %v1530 = vrsqrt.pop %v1514
    %v1531 = vrsqrt.pop %v1515
    %v1532 = vrsqrt.pop %v1516
    %v1533 = vrsqrt.pop %v1517
    %v1534 = vrsqrt.pop %v1518
    %v1535 = vrsqrt.pop %v1519
    %v1536 = vmul.f32 %v119, %v1520
    %v1537 = vmul.f32 %v120, %v1521
    %v1538 = vmul.f32 %v121, %v1522
    %v1539 = vmul.f32 %v122, %v1523
    %v1540 = vmul.f32 %v123, %v1524
    %v1541 = vmul.f32 %v124, %v1525
    %v1542 = vmul.f32 %v125, %v1526
    %v1543 = vmul.f32 %v126, %v1527
    %v1544 = vmul.f32 %v127, %v1528
    %v1545 = vmul.f32 %v128, %v1529
    %v1546 = vmul.f32 %v129, %v1530
    %v1547 = vmul.f32 %v130, %v1531
    %v1548 = vmul.f32 %v131, %v1532
    %v1549 = vmul.f32 %v132, %v1533
    %v1550 = vmul.f32 %v133, %v1534
    %v1551 = vmul.f32 %v134, %v1535
    %v1552 = vmul.f32 %v1360, %v1536
    %v1553 = vmul.f32 %v1361, %v1537
    %v1554 = vmul.f32 %v1362, %v1538
    %v1555 = vmul.f32 %v1363, %v1539
    %v1556 = vmul.f32 %v1364, %v1540
    %v1557 = vmul.f32 %v1365, %v1541
    %v1558 = vmul.f32 %v1366, %v1542
    %v1559 = vmul.f32 %v1367, %v1543
    %v1560 = vmul.f32 %v1368, %v1544
    %v1561 = vmul.f32 %v1369, %v1545
    %v1562 = vmul.f32 %v1370, %v1546
    %v1563 = vmul.f32 %v1371, %v1547
    %v1564 = vmul.f32 %v1372, %v1548
    %v1565 = vmul.f32 %v1373, %v1549
    %v1566 = vmul.f32 %v1374, %v1550
    %v1567 = vmul.f32 %v1375, %v1551
    %1584 = vrot.lane.b32.xlu0 %v1552, 1
    %v1585 = vpop.permute.xlu0 %1584
    %1586 = vrot.lane.b32.xlu0 %v1553, 1
    %v1587 = vpop.permute.xlu0 %1586
    %1588 = vrot.lane.b32.xlu0 %v1554, 1
    %v1589 = vpop.permute.xlu0 %1588
    %1590 = vrot.lane.b32.xlu0 %v1555, 1
    %v1591 = vpop.permute.xlu0 %1590
    %1592 = vrot.lane.b32.xlu0 %v1556, 1
    %v1593 = vpop.permute.xlu0 %1592
    %1594 = vrot.lane.b32.xlu0 %v1557, 1
    %v1595 = vpop.permute.xlu0 %1594
    %1596 = vrot.lane.b32.xlu0 %v1558, 1
    %v1597 = vpop.permute.xlu0 %1596
    %1598 = vrot.lane.b32.xlu0 %v1559, 1
    %v1599 = vpop.permute.xlu0 %1598
    %1600 = vrot.lane.b32.xlu0 %v1560, 1
    %v1601 = vpop.permute.xlu0 %1600
    %1602 = vrot.lane.b32.xlu0 %v1561, 1
    %v1603 = vpop.permute.xlu0 %1602
    %1604 = vrot.lane.b32.xlu0 %v1562, 1
    %v1605 = vpop.permute.xlu0 %1604
    %1606 = vrot.lane.b32.xlu0 %v1563, 1
    %v1607 = vpop.permute.xlu0 %1606
    %1608 = vrot.lane.b32.xlu0 %v1564, 1
    %v1609 = vpop.permute.xlu0 %1608
    %1610 = vrot.lane.b32.xlu0 %v1565, 1
    %v1611 = vpop.permute.xlu0 %1610
    %1612 = vrot.lane.b32.xlu0 %v1566, 1
    %v1613 = vpop.permute.xlu0 %1612
    %1614 = vrot.lane.b32.xlu0 %v1567, 1
    %v1615 = vpop.permute.xlu0 %1614
    %v1632 = vsub.f32 %v119, %v1585
    %v1633 = vsub.f32 %v120, %v1587
    %v1634 = vsub.f32 %v121, %v1589
    %v1635 = vsub.f32 %v122, %v1591
    %v1636 = vsub.f32 %v123, %v1593
    %v1637 = vsub.f32 %v124, %v1595
    %v1638 = vsub.f32 %v125, %v1597
    %v1639 = vsub.f32 %v126, %v1599
    %v1640 = vsub.f32 %v127, %v1601
    %v1641 = vsub.f32 %v128, %v1603
    %v1642 = vsub.f32 %v129, %v1605
    %v1643 = vsub.f32 %v130, %v1607
    %v1644 = vsub.f32 %v131, %v1609
    %v1645 = vsub.f32 %v132, %v1611
    %v1646 = vsub.f32 %v133, %v1613
    %v1647 = vsub.f32 %v134, %v1615
    %1649 = vset.pattern.permute.xlu0 2
    %1650 = vperm.xlu0 %1649, %v1536
    %v1651 = vpop.permute.xlu0 %1650
    %1654 = vset.pattern.permute.xlu0 2
    %1655 = vperm.xlu0 %1654, %v1537
    %v1656 = vpop.permute.xlu0 %1655
    %1659 = vset.pattern.permute.xlu0 2
    %1660 = vperm.xlu0 %1659, %v1538
    %v1661 = vpop.permute.xlu0 %1660
    %1664 = vset.pattern.permute.xlu0 2
    %1665 = vperm.xlu0 %1664, %v1539
    %v1666 = vpop.permute.xlu0 %1665
    %1669 = vset.pattern.permute.xlu0 2
    %1670 = vperm.xlu0 %1669, %v1540
    %v1671 = vpop.permute.xlu0 %1670
    %1674 = vset.pattern.permute.xlu0 2
    %1675 = vperm.xlu0 %1674, %v1541
    %v1676 = vpop.permute.xlu0 %1675
    %1679 = vset.pattern.permute.xlu0 2
    %1680 = vperm.xlu0 %1679, %v1542
    %v1681 = vpop.permute.xlu0 %1680
    %1684 = vset.pattern.permute.xlu0 2
    %1685 = vperm.xlu0 %1684, %v1543
    %v1686 = vpop.permute.xlu0 %1685
    %1689 = vset.pattern.permute.xlu0 2
    %1690 = vperm.xlu0 %1689, %v1544
    %v1691 = vpop.permute.xlu0 %1690
    %1694 = vset.pattern.permute.xlu0 2
    %1695 = vperm.xlu0 %1694, %v1545
    %v1696 = vpop.permute.xlu0 %1695
    %1699 = vset.pattern.permute.xlu0 2
    %1700 = vperm.xlu0 %1699, %v1546
    %v1701 = vpop.permute.xlu0 %1700
    %1704 = vset.pattern.permute.xlu0 2
    %1705 = vperm.xlu0 %1704, %v1547
    %v1706 = vpop.permute.xlu0 %1705
    %1709 = vset.pattern.permute.xlu0 2
    %1710 = vperm.xlu0 %1709, %v1548
    %v1711 = vpop.permute.xlu0 %1710
    %1714 = vset.pattern.permute.xlu0 2
    %1715 = vperm.xlu0 %1714, %v1549
    %v1716 = vpop.permute.xlu0 %1715
    %1719 = vset.pattern.permute.xlu0 2
    %1720 = vperm.xlu0 %1719, %v1550
    %v1721 = vpop.permute.xlu0 %1720
    %1724 = vset.pattern.permute.xlu0 2
    %1725 = vperm.xlu0 %1724, %v1551
    %v1726 = vpop.permute.xlu0 %1725
    %v1728 = vmul.f32 %v1234, %v1651
    %v1729 = vmul.f32 %v1236, %v1651
    %v1730 = vmul.f32 %v1238, %v1656
    %v1731 = vmul.f32 %v1240, %v1656
    %v1732 = vmul.f32 %v1244, %v1661
    %v1733 = vmul.f32 %v1246, %v1661
    %v1734 = vmul.f32 %v1248, %v1666
    %v1735 = vmul.f32 %v1250, %v1666
    %v1736 = vmul.f32 %v1254, %v1671
    %v1737 = vmul.f32 %v1256, %v1671
    %v1738 = vmul.f32 %v1258, %v1676
    %v1739 = vmul.f32 %v1260, %v1676
    %v1740 = vmul.f32 %v1264, %v1681
    %v1741 = vmul.f32 %v1266, %v1681
    %v1742 = vmul.f32 %v1268, %v1686
    %v1743 = vmul.f32 %v1270, %v1686
    %v1744 = vmul.f32 %v1274, %v1691
    %v1745 = vmul.f32 %v1276, %v1691
    %v1746 = vmul.f32 %v1278, %v1696
    %v1747 = vmul.f32 %v1280, %v1696
    %v1748 = vmul.f32 %v1284, %v1701
    %v1749 = vmul.f32 %v1286, %v1701
    %v1750 = vmul.f32 %v1288, %v1706
    %v1751 = vmul.f32 %v1290, %v1706
    %v1752 = vmul.f32 %v1294, %v1711
    %v1753 = vmul.f32 %v1296, %v1711
    %v1754 = vmul.f32 %v1298, %v1716
    %v1755 = vmul.f32 %v1300, %v1716
    %v1756 = vmul.f32 %v1304, %v1721
    %v1757 = vmul.f32 %v1306, %v1721
    %v1758 = vmul.f32 %v1308, %v1726
    %v1759 = vmul.f32 %v1310, %v1726
    %1761 = vset.pattern.permute.xlu0 3
    %1762 = vperm.xlu0 %1761, %v1632
    %v1763 = vpop.permute.xlu0 %1762
    %1766 = vset.pattern.permute.xlu0 3
    %1767 = vperm.xlu0 %1766, %v1633
    %v1768 = vpop.permute.xlu0 %1767
    %1771 = vset.pattern.permute.xlu0 3
    %1772 = vperm.xlu0 %1771, %v1634
    %v1773 = vpop.permute.xlu0 %1772
    %1776 = vset.pattern.permute.xlu0 3
    %1777 = vperm.xlu0 %1776, %v1635
    %v1778 = vpop.permute.xlu0 %1777
    %1781 = vset.pattern.permute.xlu0 3
    %1782 = vperm.xlu0 %1781, %v1636
    %v1783 = vpop.permute.xlu0 %1782
    %1786 = vset.pattern.permute.xlu0 3
    %1787 = vperm.xlu0 %1786, %v1637
    %v1788 = vpop.permute.xlu0 %1787
    %1791 = vset.pattern.permute.xlu0 3
    %1792 = vperm.xlu0 %1791, %v1638
    %v1793 = vpop.permute.xlu0 %1792
    %1796 = vset.pattern.permute.xlu0 3
    %1797 = vperm.xlu0 %1796, %v1639
    %v1798 = vpop.permute.xlu0 %1797
    %1801 = vset.pattern.permute.xlu0 3
    %1802 = vperm.xlu0 %1801, %v1640
    %v1803 = vpop.permute.xlu0 %1802
    %1806 = vset.pattern.permute.xlu0 3
    %1807 = vperm.xlu0 %1806, %v1641
    %v1808 = vpop.permute.xlu0 %1807
    %1811 = vset.pattern.permute.xlu0 3
    %1812 = vperm.xlu0 %1811, %v1642
    %v1813 = vpop.permute.xlu0 %1812
    %1816 = vset.pattern.permute.xlu0 3
    %1817 = vperm.xlu0 %1816, %v1643
    %v1818 = vpop.permute.xlu0 %1817
    %1821 = vset.pattern.permute.xlu0 3
    %1822 = vperm.xlu0 %1821, %v1644
    %v1823 = vpop.permute.xlu0 %1822
    %1826 = vset.pattern.permute.xlu0 3
    %1827 = vperm.xlu0 %1826, %v1645
    %v1828 = vpop.permute.xlu0 %1827
    %1831 = vset.pattern.permute.xlu0 3
    %1832 = vperm.xlu0 %1831, %v1646
    %v1833 = vpop.permute.xlu0 %1832
    %1836 = vset.pattern.permute.xlu0 3
    %1837 = vperm.xlu0 %1836, %v1647
    %v1838 = vpop.permute.xlu0 %1837
    %v1840 = vadd.f32 %v1728, %v1763
    %v1841 = vadd.f32 %v1729, %v1763
    %v1842 = vadd.f32 %v1730, %v1768
    %v1843 = vadd.f32 %v1731, %v1768
    %v1844 = vadd.f32 %v1732, %v1773
    %v1845 = vadd.f32 %v1733, %v1773
    %v1846 = vadd.f32 %v1734, %v1778
    %v1847 = vadd.f32 %v1735, %v1778
    %v1848 = vadd.f32 %v1736, %v1783
    %v1849 = vadd.f32 %v1737, %v1783
    %v1850 = vadd.f32 %v1738, %v1788
    %v1851 = vadd.f32 %v1739, %v1788
    %v1852 = vadd.f32 %v1740, %v1793
    %v1853 = vadd.f32 %v1741, %v1793
    %v1854 = vadd.f32 %v1742, %v1798
    %v1855 = vadd.f32 %v1743, %v1798
    %v1856 = vadd.f32 %v1744, %v1803
    %v1857 = vadd.f32 %v1745, %v1803
    %v1858 = vadd.f32 %v1746, %v1808
    %v1859 = vadd.f32 %v1747, %v1808
    %v1860 = vadd.f32 %v1748, %v1813
    %v1861 = vadd.f32 %v1749, %v1813
    %v1862 = vadd.f32 %v1750, %v1818
    %v1863 = vadd.f32 %v1751, %v1818
    %v1864 = vadd.f32 %v1752, %v1823
    %v1865 = vadd.f32 %v1753, %v1823
    %v1866 = vadd.f32 %v1754, %v1828
    %v1867 = vadd.f32 %v1755, %v1828
    %v1868 = vadd.f32 %v1756, %v1833
    %v1869 = vadd.f32 %v1757, %v1833
    %v1870 = vadd.f32 %v1758, %v1838
    %v1871 = vadd.f32 %v1759, %v1838
    %v1872 = vmax.f32 %v1840, 0.0
    %v1873 = vmax.f32 %v1841, 0.0
    %v1874 = vmax.f32 %v1842, 0.0
    %v1875 = vmax.f32 %v1843, 0.0
    %v1876 = vmax.f32 %v1844, 0.0
    %v1877 = vmax.f32 %v1845, 0.0
    %v1878 = vmax.f32 %v1846, 0.0
    %v1879 = vmax.f32 %v1847, 0.0
    %v1880 = vmax.f32 %v1848, 0.0
    %v1881 = vmax.f32 %v1849, 0.0
    %v1882 = vmax.f32 %v1850, 0.0
    %v1883 = vmax.f32 %v1851, 0.0
    %v1884 = vmax.f32 %v1852, 0.0
    %v1885 = vmax.f32 %v1853, 0.0
    %v1886 = vmax.f32 %v1854, 0.0
    %v1887 = vmax.f32 %v1855, 0.0
    %v1888 = vmax.f32 %v1856, 0.0
    %v1889 = vmax.f32 %v1857, 0.0
    %v1890 = vmax.f32 %v1858, 0.0
    %v1891 = vmax.f32 %v1859, 0.0
    %v1892 = vmax.f32 %v1860, 0.0
    %v1893 = vmax.f32 %v1861, 0.0
    %v1894 = vmax.f32 %v1862, 0.0
    %v1895 = vmax.f32 %v1863, 0.0
    %v1896 = vmax.f32 %v1864, 0.0
    %v1897 = vmax.f32 %v1865, 0.0
    %v1898 = vmax.f32 %v1866, 0.0
    %v1899 = vmax.f32 %v1867, 0.0
    %v1900 = vmax.f32 %v1868, 0.0
    %v1901 = vmax.f32 %v1869, 0.0
    %v1902 = vmax.f32 %v1870, 0.0
    %v1903 = vmax.f32 %v1871, 0.0
    %s1904 = smul.u32 4, 4
    %s1905 = smul.u32 %s1904, 1
    %s1906 = sshll.u32 %s1905, 4
    %1907 = dma.done %s74, %s1906
    %v1908 = vld [vmem:[#allocation4] sm:$0xff]
    %v1909 = vld [vmem:[#allocation4 + $0x8] sm:$0xff]
    %v1910 = vpack.c.bf16 %v1874, %v1872
    %v1911 = vpack.c.bf16 %v1875, %v1873
    %v1912 = vpack.c.bf16 %v1878, %v1876
    %v1913 = vpack.c.bf16 %v1879, %v1877
    %v1914 = vpack.c.bf16 %v1882, %v1880
    %v1915 = vpack.c.bf16 %v1883, %v1881
    %v1916 = vpack.c.bf16 %v1886, %v1884
    %v1917 = vpack.c.bf16 %v1887, %v1885
    %v1918 = vpack.c.bf16 %v1890, %v1888
    %v1919 = vpack.c.bf16 %v1891, %v1889
    %v1920 = vpack.c.bf16 %v1894, %v1892
    %v1921 = vpack.c.bf16 %v1895, %v1893
    %v1922 = vpack.c.bf16 %v1898, %v1896
    %v1923 = vpack.c.bf16 %v1899, %v1897
    %v1924 = vpack.c.bf16 %v1902, %v1900
    %v1925 = vpack.c.bf16 %v1903, %v1901
    %1927 = vset.pattern.permute.xlu0 4
    %1928 = vperm.xlu0 %1927, %v119
    %v1929 = vpop.permute.xlu0 %1928
    %1932 = vset.pattern.permute.xlu0 4
    %1933 = vperm.xlu0 %1932, %v120
    %v1934 = vpop.permute.xlu0 %1933
    %1937 = vset.pattern.permute.xlu0 4
    %1938 = vperm.xlu0 %1937, %v121
    %v1939 = vpop.permute.xlu0 %1938
    %1942 = vset.pattern.permute.xlu0 4
    %1943 = vperm.xlu0 %1942, %v122
    %v1944 = vpop.permute.xlu0 %1943
    %1946 = vmatprep.subr.bf16.mxu0 %v1911
    %1947 = vmatpush1.bf16.msra.mxu0 %v1910
    %1948 = vmatprep.subr.bf16.mxu0 %v1913
    %1949 = vmatpush1.bf16.msra.mxu0 %v1912
    %1950 = vmatprep.subr.bf16.mxu0 %v1915
    %1951 = vmatpush1.bf16.msra.mxu0 %v1914
    %1952 = vmatprep.subr.bf16.mxu0 %v1917
    %1953 = vmatpush1.bf16.msra.mxu0 %v1916
    %1954 = vmatprep.subr.bf16.mxu0 %v1919
    %1955 = vmatpush1.bf16.msra.mxu0 %v1918
    %1956 = vmatprep.subr.bf16.mxu0 %v1921
    %1957 = vmatpush1.bf16.msra.mxu0 %v1920
    %1958 = vmatprep.subr.bf16.mxu0 %v1923
    %1959 = vmatpush1.bf16.msra.mxu0 %v1922
    %1960 = vmatprep.subr.bf16.mxu0 %v1925
    %1961 = vmatpush1.bf16.msra.mxu0 %v1924
    %1962 = vmatprep.subr.bf16.mxu0 0
    %1963 = vmatpush1.bf16.msra.mxu0 0
    %1964 = vmatprep.subr.bf16.mxu0 0
    %1965 = vmatpush1.bf16.msra.mxu0 0
    %1966 = vmatprep.subr.bf16.mxu0 0
    %1967 = vmatpush1.bf16.msra.mxu0 0
    %1968 = vmatprep.subr.bf16.mxu0 0
    %1969 = vmatpush1.bf16.msra.mxu0 0
    %1970 = vmatprep.subr.bf16.mxu0 0
    %1971 = vmatpush1.bf16.msra.mxu0 0
    %1972 = vmatprep.subr.bf16.mxu0 0
    %1973 = vmatpush1.bf16.msra.mxu0 0
    %1974 = vmatprep.subr.bf16.mxu0 0
    %1975 = vmatpush1.bf16.msra.mxu0 0
    %1976 = vmatprep.subr.bf16.mxu0 0
    %1977 = vmatpush1.bf16.msra.mxu0 0
    %1978 = vmatprep.mubr.bf16.mxu0 0
    %1979 = vmatmul.mubr.bf16.gmra.mrb[0].mxu0 %v1908
    %v1980 = vpop.f32.mrb[0].mxu0
    %v1981 = vadd.f32 %v1929, %v1980
    %v1982 = vpop.f32.mrb[0].mxu0
    %v1983 = vadd.f32 %v1929, %v1982
    %v1984 = vpop.f32.mrb[0].mxu0
    %v1985 = vadd.f32 %v1934, %v1984
    %v1986 = vpop.f32.mrb[0].mxu0
    %v1987 = vadd.f32 %v1934, %v1986
    %1988 = vmatprep.mubr.bf16.mxu0 0
    %1989 = vmatmul.mubr.bf16.gmra.mrb[0].mxu0 %v1909
    %v1990 = vpop.f32.mrb[0].mxu0
    %v1991 = vadd.f32 %v1939, %v1990
    %v1992 = vpop.f32.mrb[0].mxu0
    %v1993 = vadd.f32 %v1939, %v1992
    %v1994 = vpop.f32.mrb[0].mxu0
    %v1995 = vadd.f32 %v1944, %v1994
    %v1996 = vpop.f32.mrb[0].mxu0
    %v1997 = vadd.f32 %v1944, %v1996
    %1998 = vdwg.mxu0
    %1999 = vst [vmem:[#allocation6] sm:$0xff] %v1981
    %2000 = vst [vmem:[#allocation6 + $0x8] sm:$0xff] %v1985
    %2001 = vst [vmem:[#allocation6 + $0x10] sm:$0xff] %v1991
    %2002 = vst [vmem:[#allocation6 + $0x18] sm:$0xff] %v1995
    %s2003 = scalar_lea.vmem [#allocation6], 32
    %2004 = vst [vmem:[%s2003] sm:$0xff] %v1983
    %2005 = vst [vmem:[%s2003 + $0x8] sm:$0xff] %v1987
    %2006 = vst [vmem:[%s2003 + $0x10] sm:$0xff] %v1993
    %2007 = vst [vmem:[%s2003 + $0x18] sm:$0xff] %v1997
    // Predicated region
    $region82: #{tpu_custom_call.1} parent=1 // pred_check
      _
    $region83: #{tpu_custom_call.1} parent=1 // pred_check_branch
      %2009 = sbr.rel (0) target = $region85
    $region84: #{tpu_custom_call.1} parent=1 // pred_region
      %s2011 = ssub.s32 1024, 1024
      %2012 = vsyncadd [#allocation7], %s2011
      %s2013 = sshll.u32 [#allocation6], 4
      %s2014 = int_to_ptr.vmem [resolvable:$true] %s2013
      %2019 = dma.vmem_to_hbm [thread:$0]  %s2014, 1024, %s5, [#allocation7], 128, 128, 8
    $region85: #{tpu_custom_call.1} parent=1 // pred_fallthru
      _
    // Predicated region
    $region86: #{tpu_custom_call.1} parent=1 // pred_check
      _
    $region87: #{tpu_custom_call.1} parent=1 // pred_check_branch
      %2021 = sbr.rel (0) target = $region89
    $region88: #{tpu_custom_call.1} parent=1 // pred_region
      %2022 = dma.done [#allocation7], 1024
    $region89: #{tpu_custom_call.1} parent=1 // pred_fallthru
      _
    %2023 = vsyncpa [#allocation7], 1
  %2024 = vsyncmov [#allocation5]
  %s2025 = vpop.sfrf %2024
  %p2026 = scmp.eq.s32.totalorder %s2025, 0
  %p2027 = pneg %p2026
  %2029 = shalt.err (%p2027)
  %s2030 = scalar_lea.sflag [#allocation5], 1
  %2031 = vsyncmov %s2030
  %s2032 = vpop.sfrf %2031
  %p2033 = scmp.eq.s32.totalorder %s2032, 0
  %p2034 = pneg %p2033
  %2036 = shalt.err (%p2034)

</llo_original>
